<compile_context>
chip_gen: v5e
topology: v5e:2x2
jax: 0.10.0
libtpu: 0.0.40
codegen_flags: <defaults>
</compile_context>

<pallas_src>
import functools

import jax
import jax.numpy as jnp
from jax import lax
from jax.experimental import pallas as pl
from jax.experimental.pallas import tpu as pltpu

KSIZE = 7
PAD = KSIZE // 2
NTAPS = KSIZE * KSIZE


def cbam_kernel(x_ref, w1_ref, w2_ref, wp_ref, o_ref, *, H, W, use_mxu):
    # x_ref : (nb, C, H*W) VMEM  lane-dense block of nb images
    # w1_ref: (C, mid) if use_mxu else (mid, C)   channel-attn fc1 weight
    # w2_ref: (mid, C) if use_mxu else (C, mid)   channel-attn fc2 weight
    # wp_ref: (2, 49, H*W) VMEM  per-tap 7x7 weights with border mask pre-folded
    # o_ref : (nb, C, H*W) VMEM  output block
    nb, C, HW = x_ref.shape

    xf = x_ref[...].astype(jnp.float32)                       # (nb, C, HW)
    w1 = w1_ref[...].astype(jnp.float32)
    w2 = w2_ref[...].astype(jnp.float32)

    # ---------------- channel attention ----------------
    # Fuse avg-pool and max-pool of all nb images into one (2*nb, C) activation
    # so the shared MLP runs once per block.
    avg = jnp.sum(xf, axis=2) * (1.0 / HW)                    # (nb, C)  lane reduce
    mx = jnp.max(xf, axis=2)                                  # (nb, C)  lane reduce
    pooled = jnp.concatenate([avg, mx], axis=0)               # (2*nb, C)

    if use_mxu:
        # Production sizes: plain MXU matmuls, weights already transposed.
        h = jnp.dot(pooled, w1, preferred_element_type=jnp.float32)   # (2*nb, mid)
        h = jnp.maximum(h, 0.0)
        y = jnp.dot(h, w2, preferred_element_type=jnp.float32)        # (2*nb, C)
    else:
        # Tiny/degenerate dims (mid == 1 at demo size): avoid K=1 / N=1 matmul
        # shapes; broadcast-multiply + lane reduce is exact and cheap.
        h = jnp.sum(pooled[:, None, :] * w1[None, :, :], axis=2)      # (2*nb, mid)
        h = jnp.maximum(h, 0.0)
        y = jnp.sum(h[:, None, :] * w2[None, :, :], axis=2)           # (2*nb, C)

    ca = jax.nn.sigmoid(y[:nb] + y[nb:])                      # (nb, C)
    x_ca = xf * ca[:, :, None]                                # (nb, C, HW)

    # ---------------- spatial attention ----------------
    mean_c = jnp.mean(x_ca, axis=1)                           # (nb, HW) sublane reduce
    max_c = jnp.max(x_ca, axis=1)                             # (nb, HW)
    stacked = jnp.concatenate([mean_c, max_c], axis=0)        # (2*nb, HW)

    wp0 = wp_ref[0]                                           # (49, HW) mean-channel planes
    wp1 = wp_ref[1]                                           # (49, HW) max-channel planes
    lane_roll_ok = (HW % 128 == 0)

    # 7x7 zero-padded cross-correlation on the lane-dense flat maps: tap (dy,dx)
    # needs input[y+dy, x+dx] which is a circular lane shift by dy*W+dx; the
    # out-of-image positions are already zeroed inside the precomputed planes.
    acc = jnp.zeros((nb, HW), jnp.float32)
    t = 0
    for ki in range(KSIZE):
        dy = ki - PAD
        for kj in range(KSIZE):
            dx = kj - PAD
            off = dy * W + dx
            if off == 0:
                rolled = stacked
            else:
                shift = (-off) % HW
                if lane_roll_ok:
                    rolled = pltpu.roll(stacked, shift, axis=1)      # XLU vrot
                else:
                    rolled = jnp.roll(stacked, shift, axis=1)        # fallback
            acc = acc + rolled[:nb, :] * wp0[t:t + 1, :] \
                      + rolled[nb:, :] * wp1[t:t + 1, :]
            t += 1

    sa = jax.nn.sigmoid(acc)                                  # (nb, HW)
    # TODO(synk): for very large C*HW blocks on v7x (64 MiB VMEM), chunk this
    # gating over C with lax.fori_loop to cap the live f32 working set.
    o_ref[...] = (x_ca * sa[:, None, :]).astype(o_ref.dtype)  # full-lane store


def _vmem_capacity_bytes():
    try:
        info = pltpu.get_tpu_info()
        cap = getattr(info, "vmem_capacity_bytes", None)
        if cap:
            return int(cap)
    except Exception:
        pass
    return 64 * 1024 * 1024   # conservative default: v7x physical VMEM


def cbam_forward(x, w1, w2, wsp, *, batch_block=None):
    """CBAM forward. x: (N, C, H, W); w1: (mid, C); w2: (C, mid); wsp: (2, 7, 7)."""
    N, C, H, W = x.shape
    HW = H * W
    mid = w1.shape[0]

    x_flat = x.reshape(N, C, HW)                              # lane-dense I/O layout

    # Per-tap masked weight planes: wplanes[c, t, p] = wsp[c, ki, kj] * in_image(p, dy, dx)
    pos = jnp.arange(HW, dtype=jnp.int32)
    yy, xx = pos // W, pos % W
    masks = []
    for ki in range(KSIZE):
        dy = ki - PAD
        for kj in range(KSIZE):
            dx = kj - PAD
            ok = (yy + dy >= 0) & (yy + dy < H) & (xx + dx >= 0) & (xx + dx < W)
            masks.append(ok.astype(jnp.float32))
    mask_planes = jnp.stack(masks, axis=0)                    # (49, HW)
    w_taps = wsp.reshape(2, NTAPS).astype(jnp.float32)        # (2, 49)
    wplanes = w_taps[:, :, None] * mask_planes[None, :, :]    # (2, 49, HW)

    # MXU path gets pre-transposed weights (plain LHS@RHS contractions); tiny
    # path keeps the original orientation for the broadcast-multiply form.
    use_mxu = (mid >= 8) and (C >= 8)
    w1p = jnp.transpose(w1) if use_mxu else w1                # (C, mid) / (mid, C)
    w2p = jnp.transpose(w2) if use_mxu else w2                # (mid, C) / (C, mid)

    # ---- batch-block sizing from real per-generation VMEM capacity ----
    itemsize = jnp.dtype(x.dtype).itemsize
    io_per_img = C * HW * itemsize                            # one in/out image, I/O dtype
    f32_per_img = C * HW * 4                                  # one f32 working copy
    per_img = 4 * io_per_img + 6 * f32_per_img                # dbl-buffered in+out, f32 temps + slack
    vmem_cap = _vmem_capacity_bytes()
    if batch_block is None:
        budget = max(per_img, vmem_cap // 3)
        nb = max(1, min(N, budget // per_img))
        if N >= 2:
            nb = min(nb, max(1, N // 2))      # >=2 grid steps: keeps both v7x TCs busy
    else:
        nb = batch_block

    n_blocks = -(-N // nb)
    if n_blocks > 1 and n_blocks % 2:
        n_blocks += 1                          # even grid length for 2-TC megacore
    n_pad = n_blocks * nb
    if n_pad != N:
        x_flat = jnp.pad(x_flat, ((0, n_pad - N), (0, 0), (0, 0)))

    wplane_bytes = 2 * NTAPS * HW * 4
    est = 4 * nb * io_per_img + 6 * nb * f32_per_img + 2 * wplane_bytes + (4 << 20)
    vmem_limit = int(min(vmem_cap, max(32 * 1024 * 1024, est)))

    kernel = functools.partial(cbam_kernel, H=H, W=W, use_mxu=use_mxu)
    out_flat = pl.pallas_call(
        kernel,
        out_shape=jax.ShapeDtypeStruct((n_pad, C, HW), x.dtype),
        grid=(n_blocks,),
        in_specs=[
            pl.BlockSpec((nb, C, HW), lambda n: (n, 0, 0)),       # x block
            pl.BlockSpec(w1p.shape, lambda n: (0, 0)),            # fc1 weight
            pl.BlockSpec(w2p.shape, lambda n: (0, 0)),            # fc2 weight
            pl.BlockSpec((2, NTAPS, HW), lambda n: (0, 0, 0)),    # masked 7x7 tap planes
        ],
        out_specs=pl.BlockSpec((nb, C, HW), lambda n: (n, 0, 0)),
        compiler_params=pltpu.CompilerParams(
            dimension_semantics=("parallel",),                    # batch blocks independent
            vmem_limit_bytes=vmem_limit,
        ),
    )(x_flat, w1p, w2p, wplanes)

    out = out_flat[:N] if n_pad != N else out_flat
    return out.reshape(N, C, H, W)


def cbam_reference(x, w1, w2, wsp):
    """Pure-JAX reference matching the PyTorch CBAM forward."""
    avg = jnp.mean(x, axis=(2, 3), keepdims=True)
    mx = jnp.max(x, axis=(2, 3), keepdims=True)

    def fc(v):
        h = jnp.einsum('nchw,mc->nmhw', v, w1)
        h = jnp.maximum(h, 0.0)
        return jnp.einsum('nmhw,cm->nchw', h, w2)

    ca = jax.nn.sigmoid(fc(avg) + fc(mx))
    x1 = x * ca
    mean_c = jnp.mean(x1, axis=1, keepdims=True)
    max_c = jnp.max(x1, axis=1, keepdims=True)
    cat = jnp.concatenate([mean_c, max_c], axis=1)            # (N, 2, H, W)
    conv = lax.conv_general_dilated(
        cat, wsp[None], window_strides=(1, 1),
        padding=((PAD, PAD), (PAD, PAD)),
        dimension_numbers=('NCHW', 'OIHW', 'NCHW'))
    sa = jax.nn.sigmoid(conv)
    return x1 * sa


if __name__ == "__main__":
    key = jax.random.PRNGKey(0)
    kx, k1, k2, k3 = jax.random.split(key, 4)

    # Small shapes consistent with the module: in_planes=4, ratio=8 -> mid=1
    N, C, H, W = 2, 4, 16, 16
    ratio = 8
    mid = max(1, C // ratio)

    x = jax.random.normal(kx, (N, C, H, W), dtype=jnp.float32)
    w1 = jax.random.normal(k1, (mid, C), dtype=jnp.float32) * 0.5        # fc1 (Conv2d 1x1)
    w2 = jax.random.normal(k2, (C, mid), dtype=jnp.float32) * 0.5        # fc2 (Conv2d 1x1)
    wsp = jax.random.normal(k3, (2, KSIZE, KSIZE), dtype=jnp.float32) * 0.2  # 7x7 conv

    out = jax.block_until_ready(cbam_forward(x, w1, w2, wsp))
    ref = jax.block_until_ready(cbam_reference(x, w1, w2, wsp))

    assert out.shape == x.shape and out.dtype == x.dtype
    max_err = float(jnp.max(jnp.abs(out - ref)))
    assert max_err < 1e-4, f"max_err={max_err}"
    print("KERNEL_OK")
</pallas_src>

<mosaic_0001>
module attributes {stable_mosaic.version = 11 : i64} {
  func.func @cbam_kernel(%arg0: i32, %arg1: memref<1x4x256xf32, #tpu.memory_space<vmem>>, %arg2: memref<1x4xf32, #tpu.memory_space<vmem>>, %arg3: memref<4x1xf32, #tpu.memory_space<vmem>>, %arg4: memref<2x49x256xf32, #tpu.memory_space<vmem>>, %arg5: memref<1x4x256xf32, #tpu.memory_space<vmem>>) attributes {dimension_semantics = [#tpu.dimension_semantics<parallel>], iteration_bounds = array<i64: 2>, scalar_prefetch = 0 : i64, scratch_operands = 0 : i64, tpu.core_type = #tpu.core_type<tc>, window_params = [{transform_indices = @transform_0, window_bounds = array<i64: 1, 4, 256>}, {pipeline_mode = #tpu.pipeline_mode<synchronous>, transform_indices = @transform_1, window_bounds = array<i64: 1, 4>}, {pipeline_mode = #tpu.pipeline_mode<synchronous>, transform_indices = @transform_2, window_bounds = array<i64: 4, 1>}, {pipeline_mode = #tpu.pipeline_mode<synchronous>, transform_indices = @transform_3, window_bounds = array<i64: 2, 49, 256>}, {transform_indices = @transform_4, window_bounds = array<i64: 1, 4, 256>}]} {
    %c0 = arith.constant 0 : index
    %c0_0 = arith.constant 0 : index
    %c0_1 = arith.constant 0 : index
    %0 = vector.load %arg1[%c0, %c0_0, %c0_1] : memref<1x4x256xf32, #tpu.memory_space<vmem>>, vector<1x4x256xf32>
    %c0_2 = arith.constant 0 : index
    %c0_3 = arith.constant 0 : index
    %1 = vector.load %arg2[%c0_2, %c0_3] : memref<1x4xf32, #tpu.memory_space<vmem>>, vector<1x4xf32>
    %c0_4 = arith.constant 0 : index
    %c0_5 = arith.constant 0 : index
    %2 = vector.load %arg3[%c0_4, %c0_5] : memref<4x1xf32, #tpu.memory_space<vmem>>, vector<4x1xf32>
    %cst = arith.constant dense<0.000000e+00> : vector<1x4xf32>
    %3 = vector.multi_reduction <add>, %0, %cst [2] : vector<1x4x256xf32> to vector<1x4xf32>
    %cst_6 = arith.constant 3.906250e-03 : f32
    %4 = vector.broadcast %cst_6 : f32 to vector<1x4xf32>
    %5 = arith.mulf %3, %4 : vector<1x4xf32>
    %cst_7 = arith.constant dense<0xFF800000> : vector<1x4xf32>
    %6 = vector.multi_reduction <maximumf>, %0, %cst_7 [2] : vector<1x4x256xf32> to vector<1x4xf32>
    %7 = tpu.concatenate %5, %6 in 0 : vector<1x4xf32>, vector<1x4xf32> -> vector<2x4xf32>
    %8 = vector.shape_cast %7 : vector<2x4xf32> to vector<2x1x4xf32>
    %9 = vector.shape_cast %1 : vector<1x4xf32> to vector<1x1x4xf32>
    %10 = vector.broadcast %9 : vector<1x1x4xf32> to vector<2x1x4xf32>
    %11 = arith.mulf %8, %10 : vector<2x1x4xf32>
    %cst_8 = arith.constant dense<0.000000e+00> : vector<2x1xf32>
    %12 = vector.multi_reduction <add>, %11, %cst_8 [2] : vector<2x1x4xf32> to vector<2x1xf32>
    %cst_9 = arith.constant 0.000000e+00 : f32
    %13 = vector.broadcast %cst_9 : f32 to vector<2x1xf32>
    %14 = arith.maximumf %12, %13 : vector<2x1xf32>
    %15 = vector.shape_cast %14 : vector<2x1xf32> to vector<2x1x1xf32>
    %16 = vector.shape_cast %2 : vector<4x1xf32> to vector<1x4x1xf32>
    %17 = vector.broadcast %15 : vector<2x1x1xf32> to vector<2x4x1xf32>
    %18 = vector.broadcast %16 : vector<1x4x1xf32> to vector<2x4x1xf32>
    %19 = arith.mulf %17, %18 : vector<2x4x1xf32>
    %cst_10 = arith.constant dense<0.000000e+00> : vector<2x4xf32>
    %20 = vector.multi_reduction <add>, %19, %cst_10 [2] : vector<2x4x1xf32> to vector<2x4xf32>
    %21 = vector.extract_strided_slice %20 {offsets = [0, 0], sizes = [1, 4], strides = [1, 1]} : vector<2x4xf32> to vector<1x4xf32>
    %22 = vector.extract_strided_slice %20 {offsets = [1, 0], sizes = [1, 4], strides = [1, 1]} : vector<2x4xf32> to vector<1x4xf32>
    %23 = arith.addf %21, %22 : vector<1x4xf32>
    %24 = arith.negf %23 : vector<1x4xf32>
    %25 = math.exp %24 : vector<1x4xf32>
    %cst_11 = arith.constant 1.000000e+00 : f32
    %26 = vector.broadcast %cst_11 : f32 to vector<1x4xf32>
    %27 = arith.addf %26, %25 : vector<1x4xf32>
    %28 = arith.divf %26, %27 : vector<1x4xf32>
    %29 = vector.shape_cast %28 : vector<1x4xf32> to vector<1x4x1xf32>
    %30 = vector.broadcast %29 : vector<1x4x1xf32> to vector<1x4x256xf32>
    %31 = arith.mulf %0, %30 : vector<1x4x256xf32>
    %cst_12 = arith.constant dense<0.000000e+00> : vector<1x256xf32>
    %32 = vector.multi_reduction <add>, %31, %cst_12 [1] : vector<1x4x256xf32> to vector<1x256xf32>
    %cst_13 = arith.constant 4.000000e+00 : f32
    %33 = vector.broadcast %cst_13 : f32 to vector<1x256xf32>
    %34 = arith.divf %32, %33 : vector<1x256xf32>
    %cst_14 = arith.constant dense<0xFF800000> : vector<1x256xf32>
    %35 = vector.multi_reduction <maximumf>, %31, %cst_14 [1] : vector<1x4x256xf32> to vector<1x256xf32>
    %36 = tpu.concatenate %34, %35 in 0 : vector<1x256xf32>, vector<1x256xf32> -> vector<2x256xf32>
    %c0_15 = arith.constant 0 : index
    %c0_16 = arith.constant 0 : index
    %c0_17 = arith.constant 0 : index
    %37 = vector.load %arg4[%c0_15, %c0_16, %c0_17] : memref<2x49x256xf32, #tpu.memory_space<vmem>>, vector<1x49x256xf32>
    %38 = vector.shape_cast %37 : vector<1x49x256xf32> to vector<49x256xf32>
    %c1 = arith.constant 1 : index
    %c0_18 = arith.constant 0 : index
    %c0_19 = arith.constant 0 : index
    %39 = vector.load %arg4[%c1, %c0_18, %c0_19] : memref<2x49x256xf32, #tpu.memory_space<vmem>>, vector<1x49x256xf32>
    %40 = vector.shape_cast %39 : vector<1x49x256xf32> to vector<49x256xf32>
    %cst_20 = arith.constant 0.000000e+00 : f32
    %41 = vector.broadcast %cst_20 : f32 to vector<1x256xf32>
    %c51_i32 = arith.constant 51 : i32
    %42 = tpu.dynamic_rotate %36 by %c51_i32 dim 1 : vector<2x256xf32>, i32 -> vector<2x256xf32>
    %43 = vector.extract_strided_slice %42 {offsets = [0, 0], sizes = [1, 256], strides = [1, 1]} : vector<2x256xf32> to vector<1x256xf32>
    %44 = vector.extract_strided_slice %38 {offsets = [0, 0], sizes = [1, 256], strides = [1, 1]} : vector<49x256xf32> to vector<1x256xf32>
    %45 = arith.mulf %43, %44 : vector<1x256xf32>
    %46 = arith.addf %41, %45 : vector<1x256xf32>
    %47 = vector.extract_strided_slice %42 {offsets = [1, 0], sizes = [1, 256], strides = [1, 1]} : vector<2x256xf32> to vector<1x256xf32>
    %48 = vector.extract_strided_slice %40 {offsets = [0, 0], sizes = [1, 256], strides = [1, 1]} : vector<49x256xf32> to vector<1x256xf32>
    %49 = arith.mulf %47, %48 : vector<1x256xf32>
    %50 = arith.addf %46, %49 : vector<1x256xf32>
    %c50_i32 = arith.constant 50 : i32
    %51 = tpu.dynamic_rotate %36 by %c50_i32 dim 1 : vector<2x256xf32>, i32 -> vector<2x256xf32>
    %52 = vector.extract_strided_slice %51 {offsets = [0, 0], sizes = [1, 256], strides = [1, 1]} : vector<2x256xf32> to vector<1x256xf32>
    %53 = vector.extract_strided_slice %38 {offsets = [1, 0], sizes = [1, 256], strides = [1, 1]} : vector<49x256xf32> to vector<1x256xf32>
    %54 = arith.mulf %52, %53 : vector<1x256xf32>
    %55 = arith.addf %50, %54 : vector<1x256xf32>
    %56 = vector.extract_strided_slice %51 {offsets = [1, 0], sizes = [1, 256], strides = [1, 1]} : vector<2x256xf32> to vector<1x256xf32>
    %57 = vector.extract_strided_slice %40 {offsets = [1, 0], sizes = [1, 256], strides = [1, 1]} : vector<49x256xf32> to vector<1x256xf32>
    %58 = arith.mulf %56, %57 : vector<1x256xf32>
    %59 = arith.addf %55, %58 : vector<1x256xf32>
    %c49_i32 = arith.constant 49 : i32
    %60 = tpu.dynamic_rotate %36 by %c49_i32 dim 1 : vector<2x256xf32>, i32 -> vector<2x256xf32>
    %61 = vector.extract_strided_slice %60 {offsets = [0, 0], sizes = [1, 256], strides = [1, 1]} : vector<2x256xf32> to vector<1x256xf32>
    %62 = vector.extract_strided_slice %38 {offsets = [2, 0], sizes = [1, 256], strides = [1, 1]} : vector<49x256xf32> to vector<1x256xf32>
    %63 = arith.mulf %61, %62 : vector<1x256xf32>
    %64 = arith.addf %59, %63 : vector<1x256xf32>
    %65 = vector.extract_strided_slice %60 {offsets = [1, 0], sizes = [1, 256], strides = [1, 1]} : vector<2x256xf32> to vector<1x256xf32>
    %66 = vector.extract_strided_slice %40 {offsets = [2, 0], sizes = [1, 256], strides = [1, 1]} : vector<49x256xf32> to vector<1x256xf32>
    %67 = arith.mulf %65, %66 : vector<1x256xf32>
    %68 = arith.addf %64, %67 : vector<1x256xf32>
    %c48_i32 = arith.constant 48 : i32
    %69 = tpu.dynamic_rotate %36 by %c48_i32 dim 1 : vector<2x256xf32>, i32 -> vector<2x256xf32>
    %70 = vector.extract_strided_slice %69 {offsets = [0, 0], sizes = [1, 256], strides = [1, 1]} : vector<2x256xf32> to vector<1x256xf32>
    %71 = vector.extract_strided_slice %38 {offsets = [3, 0], sizes = [1, 256], strides = [1, 1]} : vector<49x256xf32> to vector<1x256xf32>
    %72 = arith.mulf %70, %71 : vector<1x256xf32>
    %73 = arith.addf %68, %72 : vector<1x256xf32>
    %74 = vector.extract_strided_slice %69 {offsets = [1, 0], sizes = [1, 256], strides = [1, 1]} : vector<2x256xf32> to vector<1x256xf32>
    %75 = vector.extract_strided_slice %40 {offsets = [3, 0], sizes = [1, 256], strides = [1, 1]} : vector<49x256xf32> to vector<1x256xf32>
    %76 = arith.mulf %74, %75 : vector<1x256xf32>
    %77 = arith.addf %73, %76 : vector<1x256xf32>
    %c47_i32 = arith.constant 47 : i32
    %78 = tpu.dynamic_rotate %36 by %c47_i32 dim 1 : vector<2x256xf32>, i32 -> vector<2x256xf32>
    %79 = vector.extract_strided_slice %78 {offsets = [0, 0], sizes = [1, 256], strides = [1, 1]} : vector<2x256xf32> to vector<1x256xf32>
    %80 = vector.extract_strided_slice %38 {offsets = [4, 0], sizes = [1, 256], strides = [1, 1]} : vector<49x256xf32> to vector<1x256xf32>
    %81 = arith.mulf %79, %80 : vector<1x256xf32>
    %82 = arith.addf %77, %81 : vector<1x256xf32>
    %83 = vector.extract_strided_slice %78 {offsets = [1, 0], sizes = [1, 256], strides = [1, 1]} : vector<2x256xf32> to vector<1x256xf32>
    %84 = vector.extract_strided_slice %40 {offsets = [4, 0], sizes = [1, 256], strides = [1, 1]} : vector<49x256xf32> to vector<1x256xf32>
    %85 = arith.mulf %83, %84 : vector<1x256xf32>
    %86 = arith.addf %82, %85 : vector<1x256xf32>
    %c46_i32 = arith.constant 46 : i32
    %87 = tpu.dynamic_rotate %36 by %c46_i32 dim 1 : vector<2x256xf32>, i32 -> vector<2x256xf32>
    %88 = vector.extract_strided_slice %87 {offsets = [0, 0], sizes = [1, 256], strides = [1, 1]} : vector<2x256xf32> to vector<1x256xf32>
    %89 = vector.extract_strided_slice %38 {offsets = [5, 0], sizes = [1, 256], strides = [1, 1]} : vector<49x256xf32> to vector<1x256xf32>
    %90 = arith.mulf %88, %89 : vector<1x256xf32>
    %91 = arith.addf %86, %90 : vector<1x256xf32>
    %92 = vector.extract_strided_slice %87 {offsets = [1, 0], sizes = [1, 256], strides = [1, 1]} : vector<2x256xf32> to vector<1x256xf32>
    %93 = vector.extract_strided_slice %40 {offsets = [5, 0], sizes = [1, 256], strides = [1, 1]} : vector<49x256xf32> to vector<1x256xf32>
    %94 = arith.mulf %92, %93 : vector<1x256xf32>
    %95 = arith.addf %91, %94 : vector<1x256xf32>
    %c45_i32 = arith.constant 45 : i32
    %96 = tpu.dynamic_rotate %36 by %c45_i32 dim 1 : vector<2x256xf32>, i32 -> vector<2x256xf32>
    %97 = vector.extract_strided_slice %96 {offsets = [0, 0], sizes = [1, 256], strides = [1, 1]} : vector<2x256xf32> to vector<1x256xf32>
    %98 = vector.extract_strided_slice %38 {offsets = [6, 0], sizes = [1, 256], strides = [1, 1]} : vector<49x256xf32> to vector<1x256xf32>
    %99 = arith.mulf %97, %98 : vector<1x256xf32>
    %100 = arith.addf %95, %99 : vector<1x256xf32>
    %101 = vector.extract_strided_slice %96 {offsets = [1, 0], sizes = [1, 256], strides = [1, 1]} : vector<2x256xf32> to vector<1x256xf32>
    %102 = vector.extract_strided_slice %40 {offsets = [6, 0], sizes = [1, 256], strides = [1, 1]} : vector<49x256xf32> to vector<1x256xf32>
    %103 = arith.mulf %101, %102 : vector<1x256xf32>
    %104 = arith.addf %100, %103 : vector<1x256xf32>
    %c35_i32 = arith.constant 35 : i32
    %105 = tpu.dynamic_rotate %36 by %c35_i32 dim 1 : vector<2x256xf32>, i32 -> vector<2x256xf32>
    %106 = vector.extract_strided_slice %105 {offsets = [0, 0], sizes = [1, 256], strides = [1, 1]} : vector<2x256xf32> to vector<1x256xf32>
    %107 = vector.extract_strided_slice %38 {offsets = [7, 0], sizes = [1, 256], strides = [1, 1]} : vector<49x256xf32> to vector<1x256xf32>
    %108 = arith.mulf %106, %107 : vector<1x256xf32>
    %109 = arith.addf %104, %108 : vector<1x256xf32>
    %110 = vector.extract_strided_slice %105 {offsets = [1, 0], sizes = [1, 256], strides = [1, 1]} : vector<2x256xf32> to vector<1x256xf32>
    %111 = vector.extract_strided_slice %40 {offsets = [7, 0], sizes = [1, 256], strides = [1, 1]} : vector<49x256xf32> to vector<1x256xf32>
    %112 = arith.mulf %110, %111 : vector<1x256xf32>
    %113 = arith.addf %109, %112 : vector<1x256xf32>
    %c34_i32 = arith.constant 34 : i32
    %114 = tpu.dynamic_rotate %36 by %c34_i32 dim 1 : vector<2x256xf32>, i32 -> vector<2x256xf32>
    %115 = vector.extract_strided_slice %114 {offsets = [0, 0], sizes = [1, 256], strides = [1, 1]} : vector<2x256xf32> to vector<1x256xf32>
    %116 = vector.extract_strided_slice %38 {offsets = [8, 0], sizes = [1, 256], strides = [1, 1]} : vector<49x256xf32> to vector<1x256xf32>
    %117 = arith.mulf %115, %116 : vector<1x256xf32>
    %118 = arith.addf %113, %117 : vector<1x256xf32>
    %119 = vector.extract_strided_slice %114 {offsets = [1, 0], sizes = [1, 256], strides = [1, 1]} : vector<2x256xf32> to vector<1x256xf32>
    %120 = vector.extract_strided_slice %40 {offsets = [8, 0], sizes = [1, 256], strides = [1, 1]} : vector<49x256xf32> to vector<1x256xf32>
    %121 = arith.mulf %119, %120 : vector<1x256xf32>
    %122 = arith.addf %118, %121 : vector<1x256xf32>
    %c33_i32 = arith.constant 33 : i32
    %123 = tpu.dynamic_rotate %36 by %c33_i32 dim 1 : vector<2x256xf32>, i32 -> vector<2x256xf32>
    %124 = vector.extract_strided_slice %123 {offsets = [0, 0], sizes = [1, 256], strides = [1, 1]} : vector<2x256xf32> to vector<1x256xf32>
    %125 = vector.extract_strided_slice %38 {offsets = [9, 0], sizes = [1, 256], strides = [1, 1]} : vector<49x256xf32> to vector<1x256xf32>
    %126 = arith.mulf %124, %125 : vector<1x256xf32>
    %127 = arith.addf %122, %126 : vector<1x256xf32>
    %128 = vector.extract_strided_slice %123 {offsets = [1, 0], sizes = [1, 256], strides = [1, 1]} : vector<2x256xf32> to vector<1x256xf32>
    %129 = vector.extract_strided_slice %40 {offsets = [9, 0], sizes = [1, 256], strides = [1, 1]} : vector<49x256xf32> to vector<1x256xf32>
    %130 = arith.mulf %128, %129 : vector<1x256xf32>
    %131 = arith.addf %127, %130 : vector<1x256xf32>
    %c32_i32 = arith.constant 32 : i32
    %132 = tpu.dynamic_rotate %36 by %c32_i32 dim 1 : vector<2x256xf32>, i32 -> vector<2x256xf32>
    %133 = vector.extract_strided_slice %132 {offsets = [0, 0], sizes = [1, 256], strides = [1, 1]} : vector<2x256xf32> to vector<1x256xf32>
    %134 = vector.extract_strided_slice %38 {offsets = [10, 0], sizes = [1, 256], strides = [1, 1]} : vector<49x256xf32> to vector<1x256xf32>
    %135 = arith.mulf %133, %134 : vector<1x256xf32>
    %136 = arith.addf %131, %135 : vector<1x256xf32>
    %137 = vector.extract_strided_slice %132 {offsets = [1, 0], sizes = [1, 256], strides = [1, 1]} : vector<2x256xf32> to vector<1x256xf32>
    %138 = vector.extract_strided_slice %40 {offsets = [10, 0], sizes = [1, 256], strides = [1, 1]} : vector<49x256xf32> to vector<1x256xf32>
    %139 = arith.mulf %137, %138 : vector<1x256xf32>
    %140 = arith.addf %136, %139 : vector<1x256xf32>
    %c31_i32 = arith.constant 31 : i32
    %141 = tpu.dynamic_rotate %36 by %c31_i32 dim 1 : vector<2x256xf32>, i32 -> vector<2x256xf32>
    %142 = vector.extract_strided_slice %141 {offsets = [0, 0], sizes = [1, 256], strides = [1, 1]} : vector<2x256xf32> to vector<1x256xf32>
    %143 = vector.extract_strided_slice %38 {offsets = [11, 0], sizes = [1, 256], strides = [1, 1]} : vector<49x256xf32> to vector<1x256xf32>
    %144 = arith.mulf %142, %143 : vector<1x256xf32>
    %145 = arith.addf %140, %144 : vector<1x256xf32>
    %146 = vector.extract_strided_slice %141 {offsets = [1, 0], sizes = [1, 256], strides = [1, 1]} : vector<2x256xf32> to vector<1x256xf32>
    %147 = vector.extract_strided_slice %40 {offsets = [11, 0], sizes = [1, 256], strides = [1, 1]} : vector<49x256xf32> to vector<1x256xf32>
    %148 = arith.mulf %146, %147 : vector<1x256xf32>
    %149 = arith.addf %145, %148 : vector<1x256xf32>
    %c30_i32 = arith.constant 30 : i32
    %150 = tpu.dynamic_rotate %36 by %c30_i32 dim 1 : vector<2x256xf32>, i32 -> vector<2x256xf32>
    %151 = vector.extract_strided_slice %150 {offsets = [0, 0], sizes = [1, 256], strides = [1, 1]} : vector<2x256xf32> to vector<1x256xf32>
    %152 = vector.extract_strided_slice %38 {offsets = [12, 0], sizes = [1, 256], strides = [1, 1]} : vector<49x256xf32> to vector<1x256xf32>
    %153 = arith.mulf %151, %152 : vector<1x256xf32>
    %154 = arith.addf %149, %153 : vector<1x256xf32>
    %155 = vector.extract_strided_slice %150 {offsets = [1, 0], sizes = [1, 256], strides = [1, 1]} : vector<2x256xf32> to vector<1x256xf32>
    %156 = vector.extract_strided_slice %40 {offsets = [12, 0], sizes = [1, 256], strides = [1, 1]} : vector<49x256xf32> to vector<1x256xf32>
    %157 = arith.mulf %155, %156 : vector<1x256xf32>
    %158 = arith.addf %154, %157 : vector<1x256xf32>
    %c29_i32 = arith.constant 29 : i32
    %159 = tpu.dynamic_rotate %36 by %c29_i32 dim 1 : vector<2x256xf32>, i32 -> vector<2x256xf32>
    %160 = vector.extract_strided_slice %159 {offsets = [0, 0], sizes = [1, 256], strides = [1, 1]} : vector<2x256xf32> to vector<1x256xf32>
    %161 = vector.extract_strided_slice %38 {offsets = [13, 0], sizes = [1, 256], strides = [1, 1]} : vector<49x256xf32> to vector<1x256xf32>
    %162 = arith.mulf %160, %161 : vector<1x256xf32>
    %163 = arith.addf %158, %162 : vector<1x256xf32>
    %164 = vector.extract_strided_slice %159 {offsets = [1, 0], sizes = [1, 256], strides = [1, 1]} : vector<2x256xf32> to vector<1x256xf32>
    %165 = vector.extract_strided_slice %40 {offsets = [13, 0], sizes = [1, 256], strides = [1, 1]} : vector<49x256xf32> to vector<1x256xf32>
    %166 = arith.mulf %164, %165 : vector<1x256xf32>
    %167 = arith.addf %163, %166 : vector<1x256xf32>
    %c19_i32 = arith.constant 19 : i32
    %168 = tpu.dynamic_rotate %36 by %c19_i32 dim 1 : vector<2x256xf32>, i32 -> vector<2x256xf32>
    %169 = vector.extract_strided_slice %168 {offsets = [0, 0], sizes = [1, 256], strides = [1, 1]} : vector<2x256xf32> to vector<1x256xf32>
    %170 = vector.extract_strided_slice %38 {offsets = [14, 0], sizes = [1, 256], strides = [1, 1]} : vector<49x256xf32> to vector<1x256xf32>
    %171 = arith.mulf %169, %170 : vector<1x256xf32>
    %172 = arith.addf %167, %171 : vector<1x256xf32>
    %173 = vector.extract_strided_slice %168 {offsets = [1, 0], sizes = [1, 256], strides = [1, 1]} : vector<2x256xf32> to vector<1x256xf32>
    %174 = vector.extract_strided_slice %40 {offsets = [14, 0], sizes = [1, 256], strides = [1, 1]} : vector<49x256xf32> to vector<1x256xf32>
    %175 = arith.mulf %173, %174 : vector<1x256xf32>
    %176 = arith.addf %172, %175 : vector<1x256xf32>
    %c18_i32 = arith.constant 18 : i32
    %177 = tpu.dynamic_rotate %36 by %c18_i32 dim 1 : vector<2x256xf32>, i32 -> vector<2x256xf32>
    %178 = vector.extract_strided_slice %177 {offsets = [0, 0], sizes = [1, 256], strides = [1, 1]} : vector<2x256xf32> to vector<1x256xf32>
    %179 = vector.extract_strided_slice %38 {offsets = [15, 0], sizes = [1, 256], strides = [1, 1]} : vector<49x256xf32> to vector<1x256xf32>
    %180 = arith.mulf %178, %179 : vector<1x256xf32>
    %181 = arith.addf %176, %180 : vector<1x256xf32>
    %182 = vector.extract_strided_slice %177 {offsets = [1, 0], sizes = [1, 256], strides = [1, 1]} : vector<2x256xf32> to vector<1x256xf32>
    %183 = vector.extract_strided_slice %40 {offsets = [15, 0], sizes = [1, 256], strides = [1, 1]} : vector<49x256xf32> to vector<1x256xf32>
    %184 = arith.mulf %182, %183 : vector<1x256xf32>
    %185 = arith.addf %181, %184 : vector<1x256xf32>
    %c17_i32 = arith.constant 17 : i32
    %186 = tpu.dynamic_rotate %36 by %c17_i32 dim 1 : vector<2x256xf32>, i32 -> vector<2x256xf32>
    %187 = vector.extract_strided_slice %186 {offsets = [0, 0], sizes = [1, 256], strides = [1, 1]} : vector<2x256xf32> to vector<1x256xf32>
    %188 = vector.extract_strided_slice %38 {offsets = [16, 0], sizes = [1, 256], strides = [1, 1]} : vector<49x256xf32> to vector<1x256xf32>
    %189 = arith.mulf %187, %188 : vector<1x256xf32>
    %190 = arith.addf %185, %189 : vector<1x256xf32>
    %191 = vector.extract_strided_slice %186 {offsets = [1, 0], sizes = [1, 256], strides = [1, 1]} : vector<2x256xf32> to vector<1x256xf32>
    %192 = vector.extract_strided_slice %40 {offsets = [16, 0], sizes = [1, 256], strides = [1, 1]} : vector<49x256xf32> to vector<1x256xf32>
    %193 = arith.mulf %191, %192 : vector<1x256xf32>
    %194 = arith.addf %190, %193 : vector<1x256xf32>
    %c16_i32 = arith.constant 16 : i32
    %195 = tpu.dynamic_rotate %36 by %c16_i32 dim 1 : vector<2x256xf32>, i32 -> vector<2x256xf32>
    %196 = vector.extract_strided_slice %195 {offsets = [0, 0], sizes = [1, 256], strides = [1, 1]} : vector<2x256xf32> to vector<1x256xf32>
    %197 = vector.extract_strided_slice %38 {offsets = [17, 0], sizes = [1, 256], strides = [1, 1]} : vector<49x256xf32> to vector<1x256xf32>
    %198 = arith.mulf %196, %197 : vector<1x256xf32>
    %199 = arith.addf %194, %198 : vector<1x256xf32>
    %200 = vector.extract_strided_slice %195 {offsets = [1, 0], sizes = [1, 256], strides = [1, 1]} : vector<2x256xf32> to vector<1x256xf32>
    %201 = vector.extract_strided_slice %40 {offsets = [17, 0], sizes = [1, 256], strides = [1, 1]} : vector<49x256xf32> to vector<1x256xf32>
    %202 = arith.mulf %200, %201 : vector<1x256xf32>
    %203 = arith.addf %199, %202 : vector<1x256xf32>
    %c15_i32 = arith.constant 15 : i32
    %204 = tpu.dynamic_rotate %36 by %c15_i32 dim 1 : vector<2x256xf32>, i32 -> vector<2x256xf32>
    %205 = vector.extract_strided_slice %204 {offsets = [0, 0], sizes = [1, 256], strides = [1, 1]} : vector<2x256xf32> to vector<1x256xf32>
    %206 = vector.extract_strided_slice %38 {offsets = [18, 0], sizes = [1, 256], strides = [1, 1]} : vector<49x256xf32> to vector<1x256xf32>
    %207 = arith.mulf %205, %206 : vector<1x256xf32>
    %208 = arith.addf %203, %207 : vector<1x256xf32>
    %209 = vector.extract_strided_slice %204 {offsets = [1, 0], sizes = [1, 256], strides = [1, 1]} : vector<2x256xf32> to vector<1x256xf32>
    %210 = vector.extract_strided_slice %40 {offsets = [18, 0], sizes = [1, 256], strides = [1, 1]} : vector<49x256xf32> to vector<1x256xf32>
    %211 = arith.mulf %209, %210 : vector<1x256xf32>
    %212 = arith.addf %208, %211 : vector<1x256xf32>
    %c14_i32 = arith.constant 14 : i32
    %213 = tpu.dynamic_rotate %36 by %c14_i32 dim 1 : vector<2x256xf32>, i32 -> vector<2x256xf32>
    %214 = vector.extract_strided_slice %213 {offsets = [0, 0], sizes = [1, 256], strides = [1, 1]} : vector<2x256xf32> to vector<1x256xf32>
    %215 = vector.extract_strided_slice %38 {offsets = [19, 0], sizes = [1, 256], strides = [1, 1]} : vector<49x256xf32> to vector<1x256xf32>
    %216 = arith.mulf %214, %215 : vector<1x256xf32>
    %217 = arith.addf %212, %216 : vector<1x256xf32>
    %218 = vector.extract_strided_slice %213 {offsets = [1, 0], sizes = [1, 256], strides = [1, 1]} : vector<2x256xf32> to vector<1x256xf32>
    %219 = vector.extract_strided_slice %40 {offsets = [19, 0], sizes = [1, 256], strides = [1, 1]} : vector<49x256xf32> to vector<1x256xf32>
    %220 = arith.mulf %218, %219 : vector<1x256xf32>
    %221 = arith.addf %217, %220 : vector<1x256xf32>
    %c13_i32 = arith.constant 13 : i32
    %222 = tpu.dynamic_rotate %36 by %c13_i32 dim 1 : vector<2x256xf32>, i32 -> vector<2x256xf32>
    %223 = vector.extract_strided_slice %222 {offsets = [0, 0], sizes = [1, 256], strides = [1, 1]} : vector<2x256xf32> to vector<1x256xf32>
    %224 = vector.extract_strided_slice %38 {offsets = [20, 0], sizes = [1, 256], strides = [1, 1]} : vector<49x256xf32> to vector<1x256xf32>
    %225 = arith.mulf %223, %224 : vector<1x256xf32>
    %226 = arith.addf %221, %225 : vector<1x256xf32>
    %227 = vector.extract_strided_slice %222 {offsets = [1, 0], sizes = [1, 256], strides = [1, 1]} : vector<2x256xf32> to vector<1x256xf32>
    %228 = vector.extract_strided_slice %40 {offsets = [20, 0], sizes = [1, 256], strides = [1, 1]} : vector<49x256xf32> to vector<1x256xf32>
    %229 = arith.mulf %227, %228 : vector<1x256xf32>
    %230 = arith.addf %226, %229 : vector<1x256xf32>
    %c3_i32 = arith.constant 3 : i32
    %231 = tpu.dynamic_rotate %36 by %c3_i32 dim 1 : vector<2x256xf32>, i32 -> vector<2x256xf32>
    %232 = vector.extract_strided_slice %231 {offsets = [0, 0], sizes = [1, 256], strides = [1, 1]} : vector<2x256xf32> to vector<1x256xf32>
    %233 = vector.extract_strided_slice %38 {offsets = [21, 0], sizes = [1, 256], strides = [1, 1]} : vector<49x256xf32> to vector<1x256xf32>
    %234 = arith.mulf %232, %233 : vector<1x256xf32>
    %235 = arith.addf %230, %234 : vector<1x256xf32>
    %236 = vector.extract_strided_slice %231 {offsets = [1, 0], sizes = [1, 256], strides = [1, 1]} : vector<2x256xf32> to vector<1x256xf32>
    %237 = vector.extract_strided_slice %40 {offsets = [21, 0], sizes = [1, 256], strides = [1, 1]} : vector<49x256xf32> to vector<1x256xf32>
    %238 = arith.mulf %236, %237 : vector<1x256xf32>
    %239 = arith.addf %235, %238 : vector<1x256xf32>
    %c2_i32 = arith.constant 2 : i32
    %240 = tpu.dynamic_rotate %36 by %c2_i32 dim 1 : vector<2x256xf32>, i32 -> vector<2x256xf32>
    %241 = vector.extract_strided_slice %240 {offsets = [0, 0], sizes = [1, 256], strides = [1, 1]} : vector<2x256xf32> to vector<1x256xf32>
    %242 = vector.extract_strided_slice %38 {offsets = [22, 0], sizes = [1, 256], strides = [1, 1]} : vector<49x256xf32> to vector<1x256xf32>
    %243 = arith.mulf %241, %242 : vector<1x256xf32>
    %244 = arith.addf %239, %243 : vector<1x256xf32>
    %245 = vector.extract_strided_slice %240 {offsets = [1, 0], sizes = [1, 256], strides = [1, 1]} : vector<2x256xf32> to vector<1x256xf32>
    %246 = vector.extract_strided_slice %40 {offsets = [22, 0], sizes = [1, 256], strides = [1, 1]} : vector<49x256xf32> to vector<1x256xf32>
    %247 = arith.mulf %245, %246 : vector<1x256xf32>
    %248 = arith.addf %244, %247 : vector<1x256xf32>
    %c1_i32 = arith.constant 1 : i32
    %249 = tpu.dynamic_rotate %36 by %c1_i32 dim 1 : vector<2x256xf32>, i32 -> vector<2x256xf32>
    %250 = vector.extract_strided_slice %249 {offsets = [0, 0], sizes = [1, 256], strides = [1, 1]} : vector<2x256xf32> to vector<1x256xf32>
    %251 = vector.extract_strided_slice %38 {offsets = [23, 0], sizes = [1, 256], strides = [1, 1]} : vector<49x256xf32> to vector<1x256xf32>
    %252 = arith.mulf %250, %251 : vector<1x256xf32>
    %253 = arith.addf %248, %252 : vector<1x256xf32>
    %254 = vector.extract_strided_slice %249 {offsets = [1, 0], sizes = [1, 256], strides = [1, 1]} : vector<2x256xf32> to vector<1x256xf32>
    %255 = vector.extract_strided_slice %40 {offsets = [23, 0], sizes = [1, 256], strides = [1, 1]} : vector<49x256xf32> to vector<1x256xf32>
    %256 = arith.mulf %254, %255 : vector<1x256xf32>
    %257 = arith.addf %253, %256 : vector<1x256xf32>
    %258 = vector.extract_strided_slice %36 {offsets = [0, 0], sizes = [1, 256], strides = [1, 1]} : vector<2x256xf32> to vector<1x256xf32>
    %259 = vector.extract_strided_slice %38 {offsets = [24, 0], sizes = [1, 256], strides = [1, 1]} : vector<49x256xf32> to vector<1x256xf32>
    %260 = arith.mulf %258, %259 : vector<1x256xf32>
    %261 = arith.addf %257, %260 : vector<1x256xf32>
    %262 = vector.extract_strided_slice %36 {offsets = [1, 0], sizes = [1, 256], strides = [1, 1]} : vector<2x256xf32> to vector<1x256xf32>
    %263 = vector.extract_strided_slice %40 {offsets = [24, 0], sizes = [1, 256], strides = [1, 1]} : vector<49x256xf32> to vector<1x256xf32>
    %264 = arith.mulf %262, %263 : vector<1x256xf32>
    %265 = arith.addf %261, %264 : vector<1x256xf32>
    %c255_i32 = arith.constant 255 : i32
    %266 = tpu.dynamic_rotate %36 by %c255_i32 dim 1 : vector<2x256xf32>, i32 -> vector<2x256xf32>
    %267 = vector.extract_strided_slice %266 {offsets = [0, 0], sizes = [1, 256], strides = [1, 1]} : vector<2x256xf32> to vector<1x256xf32>
    %268 = vector.extract_strided_slice %38 {offsets = [25, 0], sizes = [1, 256], strides = [1, 1]} : vector<49x256xf32> to vector<1x256xf32>
    %269 = arith.mulf %267, %268 : vector<1x256xf32>
    %270 = arith.addf %265, %269 : vector<1x256xf32>
    %271 = vector.extract_strided_slice %266 {offsets = [1, 0], sizes = [1, 256], strides = [1, 1]} : vector<2x256xf32> to vector<1x256xf32>
    %272 = vector.extract_strided_slice %40 {offsets = [25, 0], sizes = [1, 256], strides = [1, 1]} : vector<49x256xf32> to vector<1x256xf32>
    %273 = arith.mulf %271, %272 : vector<1x256xf32>
    %274 = arith.addf %270, %273 : vector<1x256xf32>
    %c254_i32 = arith.constant 254 : i32
    %275 = tpu.dynamic_rotate %36 by %c254_i32 dim 1 : vector<2x256xf32>, i32 -> vector<2x256xf32>
    %276 = vector.extract_strided_slice %275 {offsets = [0, 0], sizes = [1, 256], strides = [1, 1]} : vector<2x256xf32> to vector<1x256xf32>
    %277 = vector.extract_strided_slice %38 {offsets = [26, 0], sizes = [1, 256], strides = [1, 1]} : vector<49x256xf32> to vector<1x256xf32>
    %278 = arith.mulf %276, %277 : vector<1x256xf32>
    %279 = arith.addf %274, %278 : vector<1x256xf32>
    %280 = vector.extract_strided_slice %275 {offsets = [1, 0], sizes = [1, 256], strides = [1, 1]} : vector<2x256xf32> to vector<1x256xf32>
    %281 = vector.extract_strided_slice %40 {offsets = [26, 0], sizes = [1, 256], strides = [1, 1]} : vector<49x256xf32> to vector<1x256xf32>
    %282 = arith.mulf %280, %281 : vector<1x256xf32>
    %283 = arith.addf %279, %282 : vector<1x256xf32>
    %c253_i32 = arith.constant 253 : i32
    %284 = tpu.dynamic_rotate %36 by %c253_i32 dim 1 : vector<2x256xf32>, i32 -> vector<2x256xf32>
    %285 = vector.extract_strided_slice %284 {offsets = [0, 0], sizes = [1, 256], strides = [1, 1]} : vector<2x256xf32> to vector<1x256xf32>
    %286 = vector.extract_strided_slice %38 {offsets = [27, 0], sizes = [1, 256], strides = [1, 1]} : vector<49x256xf32> to vector<1x256xf32>
    %287 = arith.mulf %285, %286 : vector<1x256xf32>
    %288 = arith.addf %283, %287 : vector<1x256xf32>
    %289 = vector.extract_strided_slice %284 {offsets = [1, 0], sizes = [1, 256], strides = [1, 1]} : vector<2x256xf32> to vector<1x256xf32>
    %290 = vector.extract_strided_slice %40 {offsets = [27, 0], sizes = [1, 256], strides = [1, 1]} : vector<49x256xf32> to vector<1x256xf32>
    %291 = arith.mulf %289, %290 : vector<1x256xf32>
    %292 = arith.addf %288, %291 : vector<1x256xf32>
    %c243_i32 = arith.constant 243 : i32
    %293 = tpu.dynamic_rotate %36 by %c243_i32 dim 1 : vector<2x256xf32>, i32 -> vector<2x256xf32>
    %294 = vector.extract_strided_slice %293 {offsets = [0, 0], sizes = [1, 256], strides = [1, 1]} : vector<2x256xf32> to vector<1x256xf32>
    %295 = vector.extract_strided_slice %38 {offsets = [28, 0], sizes = [1, 256], strides = [1, 1]} : vector<49x256xf32> to vector<1x256xf32>
    %296 = arith.mulf %294, %295 : vector<1x256xf32>
    %297 = arith.addf %292, %296 : vector<1x256xf32>
    %298 = vector.extract_strided_slice %293 {offsets = [1, 0], sizes = [1, 256], strides = [1, 1]} : vector<2x256xf32> to vector<1x256xf32>
    %299 = vector.extract_strided_slice %40 {offsets = [28, 0], sizes = [1, 256], strides = [1, 1]} : vector<49x256xf32> to vector<1x256xf32>
    %300 = arith.mulf %298, %299 : vector<1x256xf32>
    %301 = arith.addf %297, %300 : vector<1x256xf32>
    %c242_i32 = arith.constant 242 : i32
    %302 = tpu.dynamic_rotate %36 by %c242_i32 dim 1 : vector<2x256xf32>, i32 -> vector<2x256xf32>
    %303 = vector.extract_strided_slice %302 {offsets = [0, 0], sizes = [1, 256], strides = [1, 1]} : vector<2x256xf32> to vector<1x256xf32>
    %304 = vector.extract_strided_slice %38 {offsets = [29, 0], sizes = [1, 256], strides = [1, 1]} : vector<49x256xf32> to vector<1x256xf32>
    %305 = arith.mulf %303, %304 : vector<1x256xf32>
    %306 = arith.addf %301, %305 : vector<1x256xf32>
    %307 = vector.extract_strided_slice %302 {offsets = [1, 0], sizes = [1, 256], strides = [1, 1]} : vector<2x256xf32> to vector<1x256xf32>
    %308 = vector.extract_strided_slice %40 {offsets = [29, 0], sizes = [1, 256], strides = [1, 1]} : vector<49x256xf32> to vector<1x256xf32>
    %309 = arith.mulf %307, %308 : vector<1x256xf32>
    %310 = arith.addf %306, %309 : vector<1x256xf32>
    %c241_i32 = arith.constant 241 : i32
    %311 = tpu.dynamic_rotate %36 by %c241_i32 dim 1 : vector<2x256xf32>, i32 -> vector<2x256xf32>
    %312 = vector.extract_strided_slice %311 {offsets = [0, 0], sizes = [1, 256], strides = [1, 1]} : vector<2x256xf32> to vector<1x256xf32>
    %313 = vector.extract_strided_slice %38 {offsets = [30, 0], sizes = [1, 256], strides = [1, 1]} : vector<49x256xf32> to vector<1x256xf32>
    %314 = arith.mulf %312, %313 : vector<1x256xf32>
    %315 = arith.addf %310, %314 : vector<1x256xf32>
    %316 = vector.extract_strided_slice %311 {offsets = [1, 0], sizes = [1, 256], strides = [1, 1]} : vector<2x256xf32> to vector<1x256xf32>
    %317 = vector.extract_strided_slice %40 {offsets = [30, 0], sizes = [1, 256], strides = [1, 1]} : vector<49x256xf32> to vector<1x256xf32>
    %318 = arith.mulf %316, %317 : vector<1x256xf32>
    %319 = arith.addf %315, %318 : vector<1x256xf32>
    %c240_i32 = arith.constant 240 : i32
    %320 = tpu.dynamic_rotate %36 by %c240_i32 dim 1 : vector<2x256xf32>, i32 -> vector<2x256xf32>
    %321 = vector.extract_strided_slice %320 {offsets = [0, 0], sizes = [1, 256], strides = [1, 1]} : vector<2x256xf32> to vector<1x256xf32>
    %322 = vector.extract_strided_slice %38 {offsets = [31, 0], sizes = [1, 256], strides = [1, 1]} : vector<49x256xf32> to vector<1x256xf32>
    %323 = arith.mulf %321, %322 : vector<1x256xf32>
    %324 = arith.addf %319, %323 : vector<1x256xf32>
    %325 = vector.extract_strided_slice %320 {offsets = [1, 0], sizes = [1, 256], strides = [1, 1]} : vector<2x256xf32> to vector<1x256xf32>
    %326 = vector.extract_strided_slice %40 {offsets = [31, 0], sizes = [1, 256], strides = [1, 1]} : vector<49x256xf32> to vector<1x256xf32>
    %327 = arith.mulf %325, %326 : vector<1x256xf32>
    %328 = arith.addf %324, %327 : vector<1x256xf32>
    %c239_i32 = arith.constant 239 : i32
    %329 = tpu.dynamic_rotate %36 by %c239_i32 dim 1 : vector<2x256xf32>, i32 -> vector<2x256xf32>
    %330 = vector.extract_strided_slice %329 {offsets = [0, 0], sizes = [1, 256], strides = [1, 1]} : vector<2x256xf32> to vector<1x256xf32>
    %331 = vector.extract_strided_slice %38 {offsets = [32, 0], sizes = [1, 256], strides = [1, 1]} : vector<49x256xf32> to vector<1x256xf32>
    %332 = arith.mulf %330, %331 : vector<1x256xf32>
    %333 = arith.addf %328, %332 : vector<1x256xf32>
    %334 = vector.extract_strided_slice %329 {offsets = [1, 0], sizes = [1, 256], strides = [1, 1]} : vector<2x256xf32> to vector<1x256xf32>
    %335 = vector.extract_strided_slice %40 {offsets = [32, 0], sizes = [1, 256], strides = [1, 1]} : vector<49x256xf32> to vector<1x256xf32>
    %336 = arith.mulf %334, %335 : vector<1x256xf32>
    %337 = arith.addf %333, %336 : vector<1x256xf32>
    %c238_i32 = arith.constant 238 : i32
    %338 = tpu.dynamic_rotate %36 by %c238_i32 dim 1 : vector<2x256xf32>, i32 -> vector<2x256xf32>
    %339 = vector.extract_strided_slice %338 {offsets = [0, 0], sizes = [1, 256], strides = [1, 1]} : vector<2x256xf32> to vector<1x256xf32>
    %340 = vector.extract_strided_slice %38 {offsets = [33, 0], sizes = [1, 256], strides = [1, 1]} : vector<49x256xf32> to vector<1x256xf32>
    %341 = arith.mulf %339, %340 : vector<1x256xf32>
    %342 = arith.addf %337, %341 : vector<1x256xf32>
    %343 = vector.extract_strided_slice %338 {offsets = [1, 0], sizes = [1, 256], strides = [1, 1]} : vector<2x256xf32> to vector<1x256xf32>
    %344 = vector.extract_strided_slice %40 {offsets = [33, 0], sizes = [1, 256], strides = [1, 1]} : vector<49x256xf32> to vector<1x256xf32>
    %345 = arith.mulf %343, %344 : vector<1x256xf32>
    %346 = arith.addf %342, %345 : vector<1x256xf32>
    %c237_i32 = arith.constant 237 : i32
    %347 = tpu.dynamic_rotate %36 by %c237_i32 dim 1 : vector<2x256xf32>, i32 -> vector<2x256xf32>
    %348 = vector.extract_strided_slice %347 {offsets = [0, 0], sizes = [1, 256], strides = [1, 1]} : vector<2x256xf32> to vector<1x256xf32>
    %349 = vector.extract_strided_slice %38 {offsets = [34, 0], sizes = [1, 256], strides = [1, 1]} : vector<49x256xf32> to vector<1x256xf32>
    %350 = arith.mulf %348, %349 : vector<1x256xf32>
    %351 = arith.addf %346, %350 : vector<1x256xf32>
    %352 = vector.extract_strided_slice %347 {offsets = [1, 0], sizes = [1, 256], strides = [1, 1]} : vector<2x256xf32> to vector<1x256xf32>
    %353 = vector.extract_strided_slice %40 {offsets = [34, 0], sizes = [1, 256], strides = [1, 1]} : vector<49x256xf32> to vector<1x256xf32>
    %354 = arith.mulf %352, %353 : vector<1x256xf32>
    %355 = arith.addf %351, %354 : vector<1x256xf32>
    %c227_i32 = arith.constant 227 : i32
    %356 = tpu.dynamic_rotate %36 by %c227_i32 dim 1 : vector<2x256xf32>, i32 -> vector<2x256xf32>
    %357 = vector.extract_strided_slice %356 {offsets = [0, 0], sizes = [1, 256], strides = [1, 1]} : vector<2x256xf32> to vector<1x256xf32>
    %358 = vector.extract_strided_slice %38 {offsets = [35, 0], sizes = [1, 256], strides = [1, 1]} : vector<49x256xf32> to vector<1x256xf32>
    %359 = arith.mulf %357, %358 : vector<1x256xf32>
    %360 = arith.addf %355, %359 : vector<1x256xf32>
    %361 = vector.extract_strided_slice %356 {offsets = [1, 0], sizes = [1, 256], strides = [1, 1]} : vector<2x256xf32> to vector<1x256xf32>
    %362 = vector.extract_strided_slice %40 {offsets = [35, 0], sizes = [1, 256], strides = [1, 1]} : vector<49x256xf32> to vector<1x256xf32>
    %363 = arith.mulf %361, %362 : vector<1x256xf32>
    %364 = arith.addf %360, %363 : vector<1x256xf32>
    %c226_i32 = arith.constant 226 : i32
    %365 = tpu.dynamic_rotate %36 by %c226_i32 dim 1 : vector<2x256xf32>, i32 -> vector<2x256xf32>
    %366 = vector.extract_strided_slice %365 {offsets = [0, 0], sizes = [1, 256], strides = [1, 1]} : vector<2x256xf32> to vector<1x256xf32>
    %367 = vector.extract_strided_slice %38 {offsets = [36, 0], sizes = [1, 256], strides = [1, 1]} : vector<49x256xf32> to vector<1x256xf32>
    %368 = arith.mulf %366, %367 : vector<1x256xf32>
    %369 = arith.addf %364, %368 : vector<1x256xf32>
    %370 = vector.extract_strided_slice %365 {offsets = [1, 0], sizes = [1, 256], strides = [1, 1]} : vector<2x256xf32> to vector<1x256xf32>
    %371 = vector.extract_strided_slice %40 {offsets = [36, 0], sizes = [1, 256], strides = [1, 1]} : vector<49x256xf32> to vector<1x256xf32>
    %372 = arith.mulf %370, %371 : vector<1x256xf32>
    %373 = arith.addf %369, %372 : vector<1x256xf32>
    %c225_i32 = arith.constant 225 : i32
    %374 = tpu.dynamic_rotate %36 by %c225_i32 dim 1 : vector<2x256xf32>, i32 -> vector<2x256xf32>
    %375 = vector.extract_strided_slice %374 {offsets = [0, 0], sizes = [1, 256], strides = [1, 1]} : vector<2x256xf32> to vector<1x256xf32>
    %376 = vector.extract_strided_slice %38 {offsets = [37, 0], sizes = [1, 256], strides = [1, 1]} : vector<49x256xf32> to vector<1x256xf32>
    %377 = arith.mulf %375, %376 : vector<1x256xf32>
    %378 = arith.addf %373, %377 : vector<1x256xf32>
    %379 = vector.extract_strided_slice %374 {offsets = [1, 0], sizes = [1, 256], strides = [1, 1]} : vector<2x256xf32> to vector<1x256xf32>
    %380 = vector.extract_strided_slice %40 {offsets = [37, 0], sizes = [1, 256], strides = [1, 1]} : vector<49x256xf32> to vector<1x256xf32>
    %381 = arith.mulf %379, %380 : vector<1x256xf32>
    %382 = arith.addf %378, %381 : vector<1x256xf32>
    %c224_i32 = arith.constant 224 : i32
    %383 = tpu.dynamic_rotate %36 by %c224_i32 dim 1 : vector<2x256xf32>, i32 -> vector<2x256xf32>
    %384 = vector.extract_strided_slice %383 {offsets = [0, 0], sizes = [1, 256], strides = [1, 1]} : vector<2x256xf32> to vector<1x256xf32>
    %385 = vector.extract_strided_slice %38 {offsets = [38, 0], sizes = [1, 256], strides = [1, 1]} : vector<49x256xf32> to vector<1x256xf32>
    %386 = arith.mulf %384, %385 : vector<1x256xf32>
    %387 = arith.addf %382, %386 : vector<1x256xf32>
    %388 = vector.extract_strided_slice %383 {offsets = [1, 0], sizes = [1, 256], strides = [1, 1]} : vector<2x256xf32> to vector<1x256xf32>
    %389 = vector.extract_strided_slice %40 {offsets = [38, 0], sizes = [1, 256], strides = [1, 1]} : vector<49x256xf32> to vector<1x256xf32>
    %390 = arith.mulf %388, %389 : vector<1x256xf32>
    %391 = arith.addf %387, %390 : vector<1x256xf32>
    %c223_i32 = arith.constant 223 : i32
    %392 = tpu.dynamic_rotate %36 by %c223_i32 dim 1 : vector<2x256xf32>, i32 -> vector<2x256xf32>
    %393 = vector.extract_strided_slice %392 {offsets = [0, 0], sizes = [1, 256], strides = [1, 1]} : vector<2x256xf32> to vector<1x256xf32>
    %394 = vector.extract_strided_slice %38 {offsets = [39, 0], sizes = [1, 256], strides = [1, 1]} : vector<49x256xf32> to vector<1x256xf32>
    %395 = arith.mulf %393, %394 : vector<1x256xf32>
    %396 = arith.addf %391, %395 : vector<1x256xf32>
    %397 = vector.extract_strided_slice %392 {offsets = [1, 0], sizes = [1, 256], strides = [1, 1]} : vector<2x256xf32> to vector<1x256xf32>
    %398 = vector.extract_strided_slice %40 {offsets = [39, 0], sizes = [1, 256], strides = [1, 1]} : vector<49x256xf32> to vector<1x256xf32>
    %399 = arith.mulf %397, %398 : vector<1x256xf32>
    %400 = arith.addf %396, %399 : vector<1x256xf32>
    %c222_i32 = arith.constant 222 : i32
    %401 = tpu.dynamic_rotate %36 by %c222_i32 dim 1 : vector<2x256xf32>, i32 -> vector<2x256xf32>
    %402 = vector.extract_strided_slice %401 {offsets = [0, 0], sizes = [1, 256], strides = [1, 1]} : vector<2x256xf32> to vector<1x256xf32>
    %403 = vector.extract_strided_slice %38 {offsets = [40, 0], sizes = [1, 256], strides = [1, 1]} : vector<49x256xf32> to vector<1x256xf32>
    %404 = arith.mulf %402, %403 : vector<1x256xf32>
    %405 = arith.addf %400, %404 : vector<1x256xf32>
    %406 = vector.extract_strided_slice %401 {offsets = [1, 0], sizes = [1, 256], strides = [1, 1]} : vector<2x256xf32> to vector<1x256xf32>
    %407 = vector.extract_strided_slice %40 {offsets = [40, 0], sizes = [1, 256], strides = [1, 1]} : vector<49x256xf32> to vector<1x256xf32>
    %408 = arith.mulf %406, %407 : vector<1x256xf32>
    %409 = arith.addf %405, %408 : vector<1x256xf32>
    %c221_i32 = arith.constant 221 : i32
    %410 = tpu.dynamic_rotate %36 by %c221_i32 dim 1 : vector<2x256xf32>, i32 -> vector<2x256xf32>
    %411 = vector.extract_strided_slice %410 {offsets = [0, 0], sizes = [1, 256], strides = [1, 1]} : vector<2x256xf32> to vector<1x256xf32>
    %412 = vector.extract_strided_slice %38 {offsets = [41, 0], sizes = [1, 256], strides = [1, 1]} : vector<49x256xf32> to vector<1x256xf32>
    %413 = arith.mulf %411, %412 : vector<1x256xf32>
    %414 = arith.addf %409, %413 : vector<1x256xf32>
    %415 = vector.extract_strided_slice %410 {offsets = [1, 0], sizes = [1, 256], strides = [1, 1]} : vector<2x256xf32> to vector<1x256xf32>
    %416 = vector.extract_strided_slice %40 {offsets = [41, 0], sizes = [1, 256], strides = [1, 1]} : vector<49x256xf32> to vector<1x256xf32>
    %417 = arith.mulf %415, %416 : vector<1x256xf32>
    %418 = arith.addf %414, %417 : vector<1x256xf32>
    %c211_i32 = arith.constant 211 : i32
    %419 = tpu.dynamic_rotate %36 by %c211_i32 dim 1 : vector<2x256xf32>, i32 -> vector<2x256xf32>
    %420 = vector.extract_strided_slice %419 {offsets = [0, 0], sizes = [1, 256], strides = [1, 1]} : vector<2x256xf32> to vector<1x256xf32>
    %421 = vector.extract_strided_slice %38 {offsets = [42, 0], sizes = [1, 256], strides = [1, 1]} : vector<49x256xf32> to vector<1x256xf32>
    %422 = arith.mulf %420, %421 : vector<1x256xf32>
    %423 = arith.addf %418, %422 : vector<1x256xf32>
    %424 = vector.extract_strided_slice %419 {offsets = [1, 0], sizes = [1, 256], strides = [1, 1]} : vector<2x256xf32> to vector<1x256xf32>
    %425 = vector.extract_strided_slice %40 {offsets = [42, 0], sizes = [1, 256], strides = [1, 1]} : vector<49x256xf32> to vector<1x256xf32>
    %426 = arith.mulf %424, %425 : vector<1x256xf32>
    %427 = arith.addf %423, %426 : vector<1x256xf32>
    %c210_i32 = arith.constant 210 : i32
    %428 = tpu.dynamic_rotate %36 by %c210_i32 dim 1 : vector<2x256xf32>, i32 -> vector<2x256xf32>
    %429 = vector.extract_strided_slice %428 {offsets = [0, 0], sizes = [1, 256], strides = [1, 1]} : vector<2x256xf32> to vector<1x256xf32>
    %430 = vector.extract_strided_slice %38 {offsets = [43, 0], sizes = [1, 256], strides = [1, 1]} : vector<49x256xf32> to vector<1x256xf32>
    %431 = arith.mulf %429, %430 : vector<1x256xf32>
    %432 = arith.addf %427, %431 : vector<1x256xf32>
    %433 = vector.extract_strided_slice %428 {offsets = [1, 0], sizes = [1, 256], strides = [1, 1]} : vector<2x256xf32> to vector<1x256xf32>
    %434 = vector.extract_strided_slice %40 {offsets = [43, 0], sizes = [1, 256], strides = [1, 1]} : vector<49x256xf32> to vector<1x256xf32>
    %435 = arith.mulf %433, %434 : vector<1x256xf32>
    %436 = arith.addf %432, %435 : vector<1x256xf32>
    %c209_i32 = arith.constant 209 : i32
    %437 = tpu.dynamic_rotate %36 by %c209_i32 dim 1 : vector<2x256xf32>, i32 -> vector<2x256xf32>
    %438 = vector.extract_strided_slice %437 {offsets = [0, 0], sizes = [1, 256], strides = [1, 1]} : vector<2x256xf32> to vector<1x256xf32>
    %439 = vector.extract_strided_slice %38 {offsets = [44, 0], sizes = [1, 256], strides = [1, 1]} : vector<49x256xf32> to vector<1x256xf32>
    %440 = arith.mulf %438, %439 : vector<1x256xf32>
    %441 = arith.addf %436, %440 : vector<1x256xf32>
    %442 = vector.extract_strided_slice %437 {offsets = [1, 0], sizes = [1, 256], strides = [1, 1]} : vector<2x256xf32> to vector<1x256xf32>
    %443 = vector.extract_strided_slice %40 {offsets = [44, 0], sizes = [1, 256], strides = [1, 1]} : vector<49x256xf32> to vector<1x256xf32>
    %444 = arith.mulf %442, %443 : vector<1x256xf32>
    %445 = arith.addf %441, %444 : vector<1x256xf32>
    %c208_i32 = arith.constant 208 : i32
    %446 = tpu.dynamic_rotate %36 by %c208_i32 dim 1 : vector<2x256xf32>, i32 -> vector<2x256xf32>
    %447 = vector.extract_strided_slice %446 {offsets = [0, 0], sizes = [1, 256], strides = [1, 1]} : vector<2x256xf32> to vector<1x256xf32>
    %448 = vector.extract_strided_slice %38 {offsets = [45, 0], sizes = [1, 256], strides = [1, 1]} : vector<49x256xf32> to vector<1x256xf32>
    %449 = arith.mulf %447, %448 : vector<1x256xf32>
    %450 = arith.addf %445, %449 : vector<1x256xf32>
    %451 = vector.extract_strided_slice %446 {offsets = [1, 0], sizes = [1, 256], strides = [1, 1]} : vector<2x256xf32> to vector<1x256xf32>
    %452 = vector.extract_strided_slice %40 {offsets = [45, 0], sizes = [1, 256], strides = [1, 1]} : vector<49x256xf32> to vector<1x256xf32>
    %453 = arith.mulf %451, %452 : vector<1x256xf32>
    %454 = arith.addf %450, %453 : vector<1x256xf32>
    %c207_i32 = arith.constant 207 : i32
    %455 = tpu.dynamic_rotate %36 by %c207_i32 dim 1 : vector<2x256xf32>, i32 -> vector<2x256xf32>
    %456 = vector.extract_strided_slice %455 {offsets = [0, 0], sizes = [1, 256], strides = [1, 1]} : vector<2x256xf32> to vector<1x256xf32>
    %457 = vector.extract_strided_slice %38 {offsets = [46, 0], sizes = [1, 256], strides = [1, 1]} : vector<49x256xf32> to vector<1x256xf32>
    %458 = arith.mulf %456, %457 : vector<1x256xf32>
    %459 = arith.addf %454, %458 : vector<1x256xf32>
    %460 = vector.extract_strided_slice %455 {offsets = [1, 0], sizes = [1, 256], strides = [1, 1]} : vector<2x256xf32> to vector<1x256xf32>
    %461 = vector.extract_strided_slice %40 {offsets = [46, 0], sizes = [1, 256], strides = [1, 1]} : vector<49x256xf32> to vector<1x256xf32>
    %462 = arith.mulf %460, %461 : vector<1x256xf32>
    %463 = arith.addf %459, %462 : vector<1x256xf32>
    %c206_i32 = arith.constant 206 : i32
    %464 = tpu.dynamic_rotate %36 by %c206_i32 dim 1 : vector<2x256xf32>, i32 -> vector<2x256xf32>
    %465 = vector.extract_strided_slice %464 {offsets = [0, 0], sizes = [1, 256], strides = [1, 1]} : vector<2x256xf32> to vector<1x256xf32>
    %466 = vector.extract_strided_slice %38 {offsets = [47, 0], sizes = [1, 256], strides = [1, 1]} : vector<49x256xf32> to vector<1x256xf32>
    %467 = arith.mulf %465, %466 : vector<1x256xf32>
    %468 = arith.addf %463, %467 : vector<1x256xf32>
    %469 = vector.extract_strided_slice %464 {offsets = [1, 0], sizes = [1, 256], strides = [1, 1]} : vector<2x256xf32> to vector<1x256xf32>
    %470 = vector.extract_strided_slice %40 {offsets = [47, 0], sizes = [1, 256], strides = [1, 1]} : vector<49x256xf32> to vector<1x256xf32>
    %471 = arith.mulf %469, %470 : vector<1x256xf32>
    %472 = arith.addf %468, %471 : vector<1x256xf32>
    %c205_i32 = arith.constant 205 : i32
    %473 = tpu.dynamic_rotate %36 by %c205_i32 dim 1 : vector<2x256xf32>, i32 -> vector<2x256xf32>
    %474 = vector.extract_strided_slice %473 {offsets = [0, 0], sizes = [1, 256], strides = [1, 1]} : vector<2x256xf32> to vector<1x256xf32>
    %475 = vector.extract_strided_slice %38 {offsets = [48, 0], sizes = [1, 256], strides = [1, 1]} : vector<49x256xf32> to vector<1x256xf32>
    %476 = arith.mulf %474, %475 : vector<1x256xf32>
    %477 = arith.addf %472, %476 : vector<1x256xf32>
    %478 = vector.extract_strided_slice %473 {offsets = [1, 0], sizes = [1, 256], strides = [1, 1]} : vector<2x256xf32> to vector<1x256xf32>
    %479 = vector.extract_strided_slice %40 {offsets = [48, 0], sizes = [1, 256], strides = [1, 1]} : vector<49x256xf32> to vector<1x256xf32>
    %480 = arith.mulf %478, %479 : vector<1x256xf32>
    %481 = arith.addf %477, %480 : vector<1x256xf32>
    %482 = arith.negf %481 : vector<1x256xf32>
    %483 = math.exp %482 : vector<1x256xf32>
    %cst_21 = arith.constant 1.000000e+00 : f32
    %484 = vector.broadcast %cst_21 : f32 to vector<1x256xf32>
    %485 = arith.addf %484, %483 : vector<1x256xf32>
    %486 = arith.divf %484, %485 : vector<1x256xf32>
    %487 = vector.shape_cast %486 : vector<1x256xf32> to vector<1x1x256xf32>
    %488 = vector.broadcast %487 : vector<1x1x256xf32> to vector<1x4x256xf32>
    %489 = arith.mulf %31, %488 : vector<1x4x256xf32>
    %c0_22 = arith.constant 0 : index
    %c0_23 = arith.constant 0 : index
    %c0_24 = arith.constant 0 : index
    %490 = vector.load %arg5[%c0_22, %c0_23, %c0_24] : memref<1x4x256xf32, #tpu.memory_space<vmem>>, vector<1x4x256xf32>
    tpu.vector_store %arg5[%c0_22, %c0_23, %c0_24], %489 {strides = array<i32>} : memref<1x4x256xf32, #tpu.memory_space<vmem>>, vector<1x4x256xf32>,
    return
  }
  func.func @transform_0(%arg0: i32) -> (i32, i32, i32) {
    %c0_i32 = arith.constant 0 : i32
    %c0_i32_0 = arith.constant 0 : i32
    %c0_i32_1 = arith.constant 0 : i32
    return %arg0, %c0_i32, %c0_i32_0 : i32, i32, i32
  }
  func.func @transform_1(%arg0: i32) -> (i32, i32) {
    %c0_i32 = arith.constant 0 : i32
    %c0_i32_0 = arith.constant 0 : i32
    %c0_i32_1 = arith.constant 0 : i32
    return %c0_i32, %c0_i32_0 : i32, i32
  }
  func.func @transform_2(%arg0: i32) -> (i32, i32) {
    %c0_i32 = arith.constant 0 : i32
    %c0_i32_0 = arith.constant 0 : i32
    %c0_i32_1 = arith.constant 0 : i32
    return %c0_i32, %c0_i32_0 : i32, i32
  }
  func.func @transform_3(%arg0: i32) -> (i32, i32, i32) {
    %c0_i32 = arith.constant 0 : i32
    %c0_i32_0 = arith.constant 0 : i32
    %c0_i32_1 = arith.constant 0 : i32
    %c0_i32_2 = arith.constant 0 : i32
    return %c0_i32, %c0_i32_0, %c0_i32_1 : i32, i32, i32
  }
  func.func @transform_4(%arg0: i32) -> (i32, i32, i32) {
    %c0_i32 = arith.constant 0 : i32
    %c0_i32_0 = arith.constant 0 : i32
    %c0_i32_1 = arith.constant 0 : i32
    return %arg0, %c0_i32, %c0_i32_0 : i32, i32, i32
  }
}

</mosaic_0001>

<llo_original>
// kernel: tpu_custom_call.1
$region0: #{tpu_custom_call.1}
  #allocation0 [shape = 'u32[]', space=smem, size = 0x4, offset = 0x4, fixed_abs, tag = 'smem constant byte address 0x4 - core index']
  #allocation1 [shape = 'u32[72,128]{1,0:T(1,128)}', space=vmem, size = 0x9000, scoped, tag = 'internal scratch']
  %s0 = inlined_call_operand.vmem [shape: f32[2,4,256], index: 0, kind: input, shape index: {}]
  %s1 = inlined_call_operand.vmem [shape: f32[1,4], index: 1, kind: input, shape index: {}]
  %s2 = inlined_call_operand.vmem [shape: f32[4,1], index: 2, kind: input, shape index: {}]
  %s3 = inlined_call_operand.vmem [shape: f32[2,49,256], index: 3, kind: input, shape index: {}]
  %s4 = inlined_call_operand.hbm [shape: f32[2,4,256], index: 4, kind: output, shape index: {}]
  %s5 = sld [smem:[#allocation0]]
  $region49: #{tpu_custom_call.1} parent=0
    _
  %s7 = ssub.s32 1, %s5
  %s8 = scalar_select 0, %s7, %s5
  $region1: #{tpu_custom_call.1} parent=0
    #allocation2 [shape = 'u8[8192]{0}', space=vmem, size = 0x2000, scoped, tag = 'output window, operand 0']
    #allocation3 [shape = 's32[2]{0}', space=sflag, size = 0x8, scoped, tag = 'scoped memory for tpu_custom_call.1']
    %9 = vsyncpa [#allocation3], 0
    %s10 = scalar_lea.sflag [#allocation3], 1
    %11 = vsyncpa %s10, 0
    loop: start=0, step=1, limit=4
    $region2: #{tpu_custom_call.1} parent=1 // loop_pre_header
      _
    $region3: #{tpu_custom_call.1} parent=1 // loop_header
      %s13 = sphi 0, %s17
      %p14 = scmp.ge.s32.totalorder %s13, 4
      %s23 = sphi 0, %s25
      %s26 = sphi 0, %s23
      %s27 = sphi 0, %s26
      %s43 = sphi 0, %s27
      %s47 = sphi 0, %s47
      %s49 = sphi 0, %s47
      %s50 = sphi 0, %s49
      %s64 = sphi 0, %s50
      %s68 = sphi 0, %s68
      %s70 = sphi 0, %s68
      %s71 = sphi 0, %s70
      %s85 = sphi 0, %s71
      %s89 = sphi 0, %s89
      %s91 = sphi 0, %s89
      %s92 = sphi 0, %s91
      %s106 = sphi 0, %s92
      %s112 = sphi 0, %s114
      %s115 = sphi 0, %s112
      %s116 = sphi 0, %s115
      %s132 = sphi 0, %s116
    $region4: #{tpu_custom_call.1} parent=1 // loop_header_branch
      %16 = sbr.rel (%p14) target = $region8
    $region5: #{tpu_custom_call.1} parent=1 // loop_body
      %s18 = ssub.s32 %s13, 1
      %s19 = ssub.s32 %s13, 2
      %s20 = sadd.s32 %s13, 1
      %s21 = ssub.s32 %s13, %s20
      %p22 = scmp.eq.s32.totalorder %s21, 0
      %s24 = sadd.s32 %s23, 1
      %s25 = scalar_select %p22, %s23, %s24
      %p28 = pneg %p22
      %p29 = scmp.eq.s32.totalorder %s13, 1
      %p30 = por %p28, %p29
      %p31 = scmp.ne.s32.totalorder %s23, %s26
      %p32 = scmp.eq.s32.totalorder %s13, 0
      %p33 = por %p31, %p32
      %p34 = scmp.ne.s32.totalorder %s23, %s26
      %p35 = scmp.eq.s32.totalorder %s18, 1
      %p36 = por %p34, %p35
      %p37 = scmp.ne.s32.totalorder %s26, %s27
      %p38 = scmp.eq.s32.totalorder %s18, 0
      %p39 = por %p37, %p38
      %p40 = scmp.ne.s32.totalorder %s26, %s27
      %p41 = scmp.eq.s32.totalorder %s19, 1
      %p42 = por %p40, %p41
      %p44 = scmp.ne.s32.totalorder %s27, %s43
      %p45 = scmp.eq.s32.totalorder %s19, 0
      %p46 = por %p44, %p45
      %s48 = sadd.s32 %s47, 1
      %p51 = scmp.eq.s32.totalorder %s13, 1
      %p52 = scmp.ne.s32.totalorder %s47, %s49
      %p53 = scmp.eq.s32.totalorder %s13, 0
      %p54 = por %p52, %p53
      %p55 = scmp.ne.s32.totalorder %s47, %s49
      %p56 = scmp.eq.s32.totalorder %s18, 1
      %p57 = por %p55, %p56
      %p58 = scmp.ne.s32.totalorder %s49, %s50
      %p59 = scmp.eq.s32.totalorder %s18, 0
      %p60 = por %p58, %p59
      %p61 = scmp.ne.s32.totalorder %s49, %s50
      %p62 = scmp.eq.s32.totalorder %s19, 1
      %p63 = por %p61, %p62
      %p65 = scmp.ne.s32.totalorder %s50, %s64
      %p66 = scmp.eq.s32.totalorder %s19, 0
      %p67 = por %p65, %p66
      %s69 = sadd.s32 %s68, 1
      %p72 = scmp.eq.s32.totalorder %s13, 1
      %p73 = scmp.ne.s32.totalorder %s68, %s70
      %p74 = scmp.eq.s32.totalorder %s13, 0
      %p75 = por %p73, %p74
      %p76 = scmp.ne.s32.totalorder %s68, %s70
      %p77 = scmp.eq.s32.totalorder %s18, 1
      %p78 = por %p76, %p77
      %p79 = scmp.ne.s32.totalorder %s70, %s71
      %p80 = scmp.eq.s32.totalorder %s18, 0
      %p81 = por %p79, %p80
      %p82 = scmp.ne.s32.totalorder %s70, %s71
      %p83 = scmp.eq.s32.totalorder %s19, 1
      %p84 = por %p82, %p83
      %p86 = scmp.ne.s32.totalorder %s71, %s85
      %p87 = scmp.eq.s32.totalorder %s19, 0
      %p88 = por %p86, %p87
      %s90 = sadd.s32 %s89, 1
      %p93 = scmp.eq.s32.totalorder %s13, 1
      %p94 = scmp.ne.s32.totalorder %s89, %s91
      %p95 = scmp.eq.s32.totalorder %s13, 0
      %p96 = por %p94, %p95
      %p97 = scmp.ne.s32.totalorder %s89, %s91
      %p98 = scmp.eq.s32.totalorder %s18, 1
      %p99 = por %p97, %p98
      %p100 = scmp.ne.s32.totalorder %s91, %s92
      %p101 = scmp.eq.s32.totalorder %s18, 0
      %p102 = por %p100, %p101
      %p103 = scmp.ne.s32.totalorder %s91, %s92
      %p104 = scmp.eq.s32.totalorder %s19, 1
      %p105 = por %p103, %p104
      %p107 = scmp.ne.s32.totalorder %s92, %s106
      %p108 = scmp.eq.s32.totalorder %s19, 0
      %p109 = por %p107, %p108
      %s110 = ssub.s32 %s13, %s20
      %p111 = scmp.eq.s32.totalorder %s110, 0
      %s113 = sadd.s32 %s112, 1
      %s114 = scalar_select %p111, %s112, %s113
      %p117 = pneg %p111
      %p118 = scmp.eq.s32.totalorder %s13, 1
      %p119 = por %p117, %p118
      %p120 = scmp.ne.s32.totalorder %s112, %s115
      %p121 = scmp.eq.s32.totalorder %s13, 0
      %p122 = por %p120, %p121
      %p123 = scmp.ne.s32.totalorder %s112, %s115
      %p124 = scmp.eq.s32.totalorder %s18, 1
      %p125 = por %p123, %p124
      %p126 = scmp.ne.s32.totalorder %s115, %s116
      %p127 = scmp.eq.s32.totalorder %s18, 0
      %p128 = por %p126, %p127
      %p129 = scmp.ne.s32.totalorder %s115, %s116
      %p130 = scmp.eq.s32.totalorder %s19, 1
      %p131 = por %p129, %p130
      %p133 = scmp.ne.s32.totalorder %s116, %s132
      %p134 = scmp.eq.s32.totalorder %s19, 0
      %p135 = por %p133, %p134
      %p136 = scmp.le.s32.totalorder 1, %s13
      %p137 = scmp.lt.s32.totalorder %s13, 3
      %p138 = pnand %p136, %p137
      %p139 = pneg %p138
      // Predicated region
      $region9: #{tpu_custom_call.1} parent=5 // pred_check
        _
      $region10: #{tpu_custom_call.1} parent=5 // pred_check_branch
        %141 = sbr.rel (%p138) target = $region12
      $region11: #{tpu_custom_call.1} parent=5 // pred_region
        %s142 = ssub.s32 %s13, 1
        // Predicated region
        $region13: #{tpu_custom_call.1} parent=11 // pred_check
          %p143 = pneg %p60
        $region14: #{tpu_custom_call.1} parent=11 // pred_check_branch
          %145 = sbr.rel (%p143) target = $region16
        $region15: #{tpu_custom_call.1} parent=11 // pred_region
          _
        $region16: #{tpu_custom_call.1} parent=11 // pred_fallthru
          _
        // Predicated region
        $region17: #{tpu_custom_call.1} parent=11 // pred_check
          %p146 = pneg %p81
        $region18: #{tpu_custom_call.1} parent=11 // pred_check_branch
          %148 = sbr.rel (%p146) target = $region20
        $region19: #{tpu_custom_call.1} parent=11 // pred_region
          _
        $region20: #{tpu_custom_call.1} parent=11 // pred_fallthru
          _
        // Predicated region
        $region21: #{tpu_custom_call.1} parent=11 // pred_check
          %p149 = pneg %p102
        $region22: #{tpu_custom_call.1} parent=11 // pred_check_branch
          %151 = sbr.rel (%p149) target = $region24
        $region23: #{tpu_custom_call.1} parent=11 // pred_region
          _
        $region24: #{tpu_custom_call.1} parent=11 // pred_fallthru
          _
      $region12: #{tpu_custom_call.1} parent=5 // pred_fallthru
        _
      %p152 = scmp.lt.s32.totalorder %s13, 2
      // Predicated region
      $region25: #{tpu_custom_call.1} parent=5 // pred_check
        %p153 = pneg %p152
      $region26: #{tpu_custom_call.1} parent=5 // pred_check_branch
        %155 = sbr.rel (%p153) target = $region28
      $region27: #{tpu_custom_call.1} parent=5 // pred_region
        // Predicated region
        $region29: #{tpu_custom_call.1} parent=27 // pred_check
          %p156 = pneg %p33
        $region30: #{tpu_custom_call.1} parent=27 // pred_check_branch
          %158 = sbr.rel (%p156) target = $region32
        $region31: #{tpu_custom_call.1} parent=27 // pred_region
          %p159 = scmp.lt.s32.totalorder %s13, 1
          %s160 = scalar_select %p159, %s13, 1
          %s161 = smul.addr %s160, 2
          %s162 = smul.addr %s161, 4
          %s163 = scalar_lea.vmem %s0, %s162
        $region32: #{tpu_custom_call.1} parent=27 // pred_fallthru
          _
      $region28: #{tpu_custom_call.1} parent=5 // pred_fallthru
        _
      %p164 = scmp.le.s32.totalorder 1, %s13
      %p165 = scmp.lt.s32.totalorder %s13, 3
      %p166 = pnand %p164, %p165
      %p167 = pneg %p166
      // Predicated region
      $region33: #{tpu_custom_call.1} parent=5 // pred_check
        _
      $region34: #{tpu_custom_call.1} parent=5 // pred_check_branch
        %169 = sbr.rel (%p166) target = $region36
      $region35: #{tpu_custom_call.1} parent=5 // pred_region
        %s170 = ssub.s32 %s13, 1
        %p171 = scmp.lt.s32.totalorder %s18, 1
        %s172 = scalar_select %p171, %s18, 1
        %s173 = smul.addr %s172, 2
        %s174 = smul.addr %s173, 4
        %s175 = scalar_lea.vmem %s0, %s174
        %p176 = pneg %p39
        %p177 = pneg %p36
        %p178 = pneg %p60
        %p179 = pneg %p57
        %p180 = pneg %p81
        %p181 = pneg %p78
        %p182 = pneg %p102
        %p183 = pneg %p99
        %p184 = pneg %p128
        %p185 = pneg %p125
        %s186 = sand.u32 %s115, 1
        %s187 = scalar_lea.sflag [#allocation3], %s186
        %s188 = sand.u32 %s115, 1
        %s189 = smul.addr %s188, 8
        %s190 = scalar_lea.vmem [#allocation2], %s189
        %p191 = scmp.lt.s32.totalorder %s18, 1
        %s192 = scalar_select %p191, %s18, 1
        %s193 = smul.addr %s192, 2
        %s194 = smul.addr %s193, 4
        %s195 = scalar_lea.vmem %s0, %s194
        %v196 = vld [vmem:[%s195] sm:$0xff]
        %v197 = vld [vmem:[%s1] sm:$0x1]
        %v198 = vld [vmem:[%s2] sm:$0xf]
        %200 = vst [vmem:[#allocation1] ss:$2 sm:$0xff] %v196
        %v201 = vld.sshfl [vmem:[#allocation1] sm:$0xff pattern:$0x75316420]
        %v202 = vld.sshfl [vmem:[#allocation1 + $0x8] sm:$0xff pattern:$0x75316420]
        %vm205 = vcmask 1043456
        %v206 = vsel %vm205, %v201, 0.0
        %v207 = vsel %vm205, %v202, 0.0
        %v208 = vadd.f32 %v206, %v207
        %209 = vadd.xlane.f32.xlu0 %v208
        %v210 = vpop.xlane.xlu0 %209
        %v211 = vmul.f32 %v210, 0.00390625
        %212 = vst [vmem:[#allocation1] ss:$2 sm:$0xff] %v196
        %v213 = vld.sshfl [vmem:[#allocation1] sm:$0xff pattern:$0x75316420]
        %v214 = vld.sshfl [vmem:[#allocation1 + $0x8] sm:$0xff pattern:$0x75316420]
        %v217 = vsel %vm205, %v213, -inf
        %v218 = vsel %vm205, %v214, -inf
        %v219 = vmax.f32 %v217, %v218
        %220 = vmax.xlane.f32.xlu0 %v219
        %v221 = vpop.xlane.xlu0 %220
        %v223 = vlaneseq
        %v224 = vand.u32 %v223, 127
        %v225 = vperm.slane %v211, %v224
        %v228 = vperm.slane %v221, %v224
        %vm230 = vcmask 1040384
        %v231 = vsel %vm230, %v225, %v228
        %v233 = vrot.slane %v231, 1
        %v235 = vmul.f32 %v231, %v197
        %v236 = vmul.f32 %v233, %v197
        %vm237 = vcmask 24576
        %v238 = vsel %vm237, %v235, 0.0
        %239 = vadd.xlane.f32.xlu0 %v238
        %v240 = vpop.xlane.xlu0 %239
        %v241 = vsel %vm237, %v236, 0.0
        %242 = vadd.xlane.f32.xlu0 %v241
        %v243 = vpop.xlane.xlu0 %242
        %v244 = vmax.f32 %v240, 0.0
        %v245 = vmax.f32 %v243, 0.0
        %v246 = vperm.slane %v244, 0
        %v247 = vperm.slane %v245, 0
        %v248 = vmul.f32 %v246, %v198
        %v249 = vmul.f32 %v247, %v198
        %v250 = vadd.f32 %v248, 0.0
        %v251 = vadd.f32 %v249, 0.0
        %v252 = vadd.f32 %v250, %v251
        %v253 = vxor.u32 %v252, 2147483648
        %v254 = vmul.f32 %v253, 1.442695
        %v255 = vpow.pop %v254
        %v256 = vadd.f32 %v255, 1.0
        %v257 = vrcp.pop %v256
        %v258 = vmul.f32 %v256, %v257
        %v259 = vsub.f32 1.0, %v258
        %v260 = vmul.f32 %v257, %v259
        %v261 = vadd.f32 %v257, %v260
        %vm262 = vweird.f32 %v256
        %vm263 = vweird.f32 %v257
        %vm264 = vmor %vm262, %vm263
        %v265 = vsel %vm264, %v257, %v261
        %v266 = vand.u32 2147483647, %v256
        %vm267 = vcmp.eq.f32.partialorder %v266, 8.507059e+37
        %v268 = vand.u32 %v256, 2147483648
        %v269 = vor.u32 1.1754944e-38, %v268
        %v270 = vsel %vm267, %v269, %v265
        %v271 = vmul.f32 1.0, %v270
        %273 = vset.pattern.permute.xlu0 0
        %274 = vperm.xlu0 %273, %v271
        %v275 = vpop.permute.xlu0 %274
        %v277 = vunpack.c.l.s4 839922192
        %v278 = vunpack.c.0.s8 %v277
        %v279 = vperm.slane %v275, %v278
        %v281 = vmul.f32 %v196, %v279
        %283 = vst [vmem:[#allocation1] ss:$2 sm:$0xff] %v281
        %v284 = vld.sshfl [vmem:[#allocation1] sm:$0xff pattern:$0x75316420]
        %v285 = vld.sshfl [vmem:[#allocation1 + $0x8] sm:$0xff pattern:$0x75316420]
        %v288 = vsel %vm205, %v284, 0.0
        %v289 = vrot.slane %v288, 4
        %v290 = vadd.f32 %v288, %v289
        %v291 = vrot.slane %v290, 2
        %v292 = vadd.f32 %v290, %v291
        %v293 = vrot.slane %v292, 1
        %v294 = vadd.f32 %v292, %v293
        %v295 = vsel %vm205, %v285, 0.0
        %v296 = vrot.slane %v295, 4
        %v297 = vadd.f32 %v295, %v296
        %v298 = vrot.slane %v297, 2
        %v299 = vadd.f32 %v297, %v298
        %v300 = vrot.slane %v299, 1
        %v301 = vadd.f32 %v299, %v300
        %v302 = vrcp.pop 4.0
        %v303 = vmul.f32 4.0, %v302
        %v304 = vsub.f32 1.0, %v303
        %v305 = vmul.f32 %v302, %v304
        %v306 = vadd.f32 %v302, %v305
        %vm307 = vweird.f32 %v302
        %v308 = vsel %vm307, %v302, %v306
        %v309 = vmul.f32 %v294, %v308
        %v310 = vmul.f32 %v301, %v308
        %311 = vst [vmem:[#allocation1] ss:$2 sm:$0xff] %v281
        %v312 = vld.sshfl [vmem:[#allocation1] sm:$0xff pattern:$0x75316420]
        %v313 = vld.sshfl [vmem:[#allocation1 + $0x8] sm:$0xff pattern:$0x75316420]
        %v316 = vsel %vm205, %v312, -inf
        %v317 = vrot.slane %v316, 4
        %v318 = vmax.f32 %v316, %v317
        %v319 = vrot.slane %v318, 2
        %v320 = vmax.f32 %v318, %v319
        %v321 = vrot.slane %v320, 1
        %v322 = vmax.f32 %v320, %v321
        %v323 = vsel %vm205, %v313, -inf
        %v324 = vrot.slane %v323, 4
        %v325 = vmax.f32 %v323, %v324
        %v326 = vrot.slane %v325, 2
        %v327 = vmax.f32 %v325, %v326
        %v328 = vrot.slane %v327, 1
        %v329 = vmax.f32 %v327, %v328
        %v330 = vsel %vm230, %v309, %v322
        %v331 = vsel %vm230, %v310, %v329
        %v332 = vld [vmem:[%s3] sm:$0xff]
        %v333 = vld [vmem:[%s3 + $0x8] sm:$0xff]
        %v334 = vld [vmem:[%s3 + $0x10] sm:$0xff]
        %v335 = vld [vmem:[%s3 + $0x18] sm:$0xff]
        %v336 = vld [vmem:[%s3 + $0x20] sm:$0xff]
        %v337 = vld [vmem:[%s3 + $0x28] sm:$0xff]
        %v338 = vld [vmem:[%s3 + $0x30] sm:$0xff]
        %v339 = vld [vmem:[%s3 + $0x38] sm:$0xff]
        %v340 = vld [vmem:[%s3 + $0x40] sm:$0xff]
        %v341 = vld [vmem:[%s3 + $0x48] sm:$0xff]
        %v342 = vld [vmem:[%s3 + $0x50] sm:$0xff]
        %v343 = vld [vmem:[%s3 + $0x58] sm:$0xff]
        %v344 = vld [vmem:[%s3 + $0x60] sm:$0x1]
        %v345 = vld [vmem:[%s3 + $0x68] sm:$0x1]
        %s346 = scalar_lea.vmem %s3, 112
        %v347 = vld [vmem:[%s346] sm:$0xff]
        %v348 = vld [vmem:[%s346 + $0x8] sm:$0xff]
        %v349 = vld [vmem:[%s346 + $0x10] sm:$0xff]
        %v350 = vld [vmem:[%s346 + $0x18] sm:$0xff]
        %v351 = vld [vmem:[%s346 + $0x20] sm:$0xff]
        %v352 = vld [vmem:[%s346 + $0x28] sm:$0xff]
        %v353 = vld [vmem:[%s346 + $0x30] sm:$0xff]
        %v354 = vld [vmem:[%s346 + $0x38] sm:$0xff]
        %v355 = vld [vmem:[%s346 + $0x40] sm:$0xff]
        %v356 = vld [vmem:[%s346 + $0x48] sm:$0xff]
        %v357 = vld [vmem:[%s346 + $0x50] sm:$0xff]
        %v358 = vld [vmem:[%s346 + $0x58] sm:$0xff]
        %v359 = vld [vmem:[%s346 + $0x60] sm:$0x1]
        %v360 = vld [vmem:[%s346 + $0x68] sm:$0x1]
        %361 = vrot.lane.b32.xlu0 %v330, 51
        %v362 = vpop.permute.xlu0 %361
        %363 = vrot.lane.b32.xlu0 %v331, 51
        %v364 = vpop.permute.xlu0 %363
        %vm365 = vcmp.lt.s32.totalorder %v224, 51
        %v366 = vsel %vm365, %v362, %v364
        %v367 = vsel %vm365, %v364, %v362
        %v368 = vmul.f32 %v367, %v332
        %v369 = vmul.f32 %v366, %v333
        %v370 = vadd.f32 %v368, 0.0
        %v371 = vadd.f32 %v369, 0.0
        %v374 = vrot.slane %v347, 7
        %v375 = vrot.slane %v348, 7
        %v378 = vmul.f32 %v367, %v374
        %v379 = vmul.f32 %v366, %v375
        %v382 = vrot.slane %v378, 1
        %v383 = vrot.slane %v379, 1
        %v386 = vadd.f32 %v370, %v382
        %v387 = vadd.f32 %v371, %v383
        %388 = vrot.lane.b32.xlu0 %v330, 50
        %v389 = vpop.permute.xlu0 %388
        %390 = vrot.lane.b32.xlu0 %v331, 50
        %v391 = vpop.permute.xlu0 %390
        %vm392 = vcmp.lt.s32.totalorder %v224, 50
        %v393 = vsel %vm392, %v389, %v391
        %v394 = vsel %vm392, %v391, %v389
        %v397 = vrot.slane %v332, 1
        %v398 = vrot.slane %v333, 1
        %v401 = vmul.f32 %v394, %v397
        %v402 = vmul.f32 %v393, %v398
        %v403 = vadd.f32 %v386, %v401
        %v404 = vadd.f32 %v387, %v402
        %v405 = vmul.f32 %v394, %v347
        %v406 = vmul.f32 %v393, %v348
        %v409 = vrot.slane %v405, 1
        %v410 = vrot.slane %v406, 1
        %v413 = vadd.f32 %v403, %v409
        %v414 = vadd.f32 %v404, %v410
        %415 = vrot.lane.b32.xlu0 %v330, 49
        %v416 = vpop.permute.xlu0 %415
        %417 = vrot.lane.b32.xlu0 %v331, 49
        %v418 = vpop.permute.xlu0 %417
        %vm419 = vcmp.lt.s32.totalorder %v224, 49
        %v420 = vsel %vm419, %v416, %v418
        %v421 = vsel %vm419, %v418, %v416
        %v422 = vrot.slane %v332, 2
        %v423 = vrot.slane %v333, 2
        %v426 = vmul.f32 %v421, %v422
        %v427 = vmul.f32 %v420, %v423
        %v428 = vadd.f32 %v413, %v426
        %v429 = vadd.f32 %v414, %v427
        %v430 = vrot.slane %v347, 1
        %v431 = vrot.slane %v348, 1
        %v434 = vmul.f32 %v421, %v430
        %v435 = vmul.f32 %v420, %v431
        %v438 = vrot.slane %v434, 1
        %v439 = vrot.slane %v435, 1
        %v442 = vadd.f32 %v428, %v438
        %v443 = vadd.f32 %v429, %v439
        %444 = vrot.lane.b32.xlu0 %v330, 48
        %v445 = vpop.permute.xlu0 %444
        %446 = vrot.lane.b32.xlu0 %v331, 48
        %v447 = vpop.permute.xlu0 %446
        %vm448 = vcmp.lt.s32.totalorder %v224, 48
        %v449 = vsel %vm448, %v445, %v447
        %v450 = vsel %vm448, %v447, %v445
        %v451 = vrot.slane %v332, 3
        %v452 = vrot.slane %v333, 3
        %v455 = vmul.f32 %v450, %v451
        %v456 = vmul.f32 %v449, %v452
        %v457 = vadd.f32 %v442, %v455
        %v458 = vadd.f32 %v443, %v456
        %v459 = vrot.slane %v347, 2
        %v460 = vrot.slane %v348, 2
        %v463 = vmul.f32 %v450, %v459
        %v464 = vmul.f32 %v449, %v460
        %v467 = vrot.slane %v463, 1
        %v468 = vrot.slane %v464, 1
        %v471 = vadd.f32 %v457, %v467
        %v472 = vadd.f32 %v458, %v468
        %473 = vrot.lane.b32.xlu0 %v330, 47
        %v474 = vpop.permute.xlu0 %473
        %475 = vrot.lane.b32.xlu0 %v331, 47
        %v476 = vpop.permute.xlu0 %475
        %vm477 = vcmp.lt.s32.totalorder %v224, 47
        %v478 = vsel %vm477, %v474, %v476
        %v479 = vsel %vm477, %v476, %v474
        %v480 = vrot.slane %v332, 4
        %v481 = vrot.slane %v333, 4
        %v484 = vmul.f32 %v479, %v480
        %v485 = vmul.f32 %v478, %v481
        %v486 = vadd.f32 %v471, %v484
        %v487 = vadd.f32 %v472, %v485
        %v488 = vrot.slane %v347, 3
        %v489 = vrot.slane %v348, 3
        %v492 = vmul.f32 %v479, %v488
        %v493 = vmul.f32 %v478, %v489
        %v496 = vrot.slane %v492, 1
        %v497 = vrot.slane %v493, 1
        %v500 = vadd.f32 %v486, %v496
        %v501 = vadd.f32 %v487, %v497
        %502 = vrot.lane.b32.xlu0 %v330, 46
        %v503 = vpop.permute.xlu0 %502
        %504 = vrot.lane.b32.xlu0 %v331, 46
        %v505 = vpop.permute.xlu0 %504
        %vm506 = vcmp.lt.s32.totalorder %v224, 46
        %v507 = vsel %vm506, %v503, %v505
        %v508 = vsel %vm506, %v505, %v503
        %v509 = vrot.slane %v332, 5
        %v510 = vrot.slane %v333, 5
        %v513 = vmul.f32 %v508, %v509
        %v514 = vmul.f32 %v507, %v510
        %v515 = vadd.f32 %v500, %v513
        %v516 = vadd.f32 %v501, %v514
        %v517 = vrot.slane %v347, 4
        %v518 = vrot.slane %v348, 4
        %v521 = vmul.f32 %v508, %v517
        %v522 = vmul.f32 %v507, %v518
        %v525 = vrot.slane %v521, 1
        %v526 = vrot.slane %v522, 1
        %v529 = vadd.f32 %v515, %v525
        %v530 = vadd.f32 %v516, %v526
        %531 = vrot.lane.b32.xlu0 %v330, 45
        %v532 = vpop.permute.xlu0 %531
        %533 = vrot.lane.b32.xlu0 %v331, 45
        %v534 = vpop.permute.xlu0 %533
        %vm535 = vcmp.lt.s32.totalorder %v224, 45
        %v536 = vsel %vm535, %v532, %v534
        %v537 = vsel %vm535, %v534, %v532
        %v538 = vrot.slane %v332, 6
        %v539 = vrot.slane %v333, 6
        %v542 = vmul.f32 %v537, %v538
        %v543 = vmul.f32 %v536, %v539
        %v544 = vadd.f32 %v529, %v542
        %v545 = vadd.f32 %v530, %v543
        %v546 = vrot.slane %v347, 5
        %v547 = vrot.slane %v348, 5
        %v550 = vmul.f32 %v537, %v546
        %v551 = vmul.f32 %v536, %v547
        %v554 = vrot.slane %v550, 1
        %v555 = vrot.slane %v551, 1
        %v558 = vadd.f32 %v544, %v554
        %v559 = vadd.f32 %v545, %v555
        %560 = vrot.lane.b32.xlu0 %v330, 35
        %v561 = vpop.permute.xlu0 %560
        %562 = vrot.lane.b32.xlu0 %v331, 35
        %v563 = vpop.permute.xlu0 %562
        %vm564 = vcmp.lt.s32.totalorder %v224, 35
        %v565 = vsel %vm564, %v561, %v563
        %v566 = vsel %vm564, %v563, %v561
        %v567 = vrot.slane %v332, 7
        %v568 = vrot.slane %v333, 7
        %v571 = vmul.f32 %v566, %v567
        %v572 = vmul.f32 %v565, %v568
        %v573 = vadd.f32 %v558, %v571
        %v574 = vadd.f32 %v559, %v572
        %v575 = vrot.slane %v347, 6
        %v576 = vrot.slane %v348, 6
        %v579 = vmul.f32 %v566, %v575
        %v580 = vmul.f32 %v565, %v576
        %v583 = vrot.slane %v579, 1
        %v584 = vrot.slane %v580, 1
        %v587 = vadd.f32 %v573, %v583
        %v588 = vadd.f32 %v574, %v584
        %589 = vrot.lane.b32.xlu0 %v330, 34
        %v590 = vpop.permute.xlu0 %589
        %591 = vrot.lane.b32.xlu0 %v331, 34
        %v592 = vpop.permute.xlu0 %591
        %vm593 = vcmp.lt.s32.totalorder %v224, 34
        %v594 = vsel %vm593, %v590, %v592
        %v595 = vsel %vm593, %v592, %v590
        %v596 = vmul.f32 %v595, %v334
        %v597 = vmul.f32 %v594, %v335
        %v598 = vadd.f32 %v587, %v596
        %v599 = vadd.f32 %v588, %v597
        %v602 = vrot.slane %v349, 7
        %v603 = vrot.slane %v350, 7
        %v606 = vmul.f32 %v595, %v602
        %v607 = vmul.f32 %v594, %v603
        %v610 = vrot.slane %v606, 1
        %v611 = vrot.slane %v607, 1
        %v614 = vadd.f32 %v598, %v610
        %v615 = vadd.f32 %v599, %v611
        %616 = vrot.lane.b32.xlu0 %v330, 33
        %v617 = vpop.permute.xlu0 %616
        %618 = vrot.lane.b32.xlu0 %v331, 33
        %v619 = vpop.permute.xlu0 %618
        %vm620 = vcmp.lt.s32.totalorder %v224, 33
        %v621 = vsel %vm620, %v617, %v619
        %v622 = vsel %vm620, %v619, %v617
        %v625 = vrot.slane %v334, 1
        %v626 = vrot.slane %v335, 1
        %v629 = vmul.f32 %v622, %v625
        %v630 = vmul.f32 %v621, %v626
        %v631 = vadd.f32 %v614, %v629
        %v632 = vadd.f32 %v615, %v630
        %v633 = vmul.f32 %v622, %v349
        %v634 = vmul.f32 %v621, %v350
        %v637 = vrot.slane %v633, 1
        %v638 = vrot.slane %v634, 1
        %v641 = vadd.f32 %v631, %v637
        %v642 = vadd.f32 %v632, %v638
        %643 = vrot.lane.b32.xlu0 %v330, 32
        %v644 = vpop.permute.xlu0 %643
        %645 = vrot.lane.b32.xlu0 %v331, 32
        %v646 = vpop.permute.xlu0 %645
        %vm647 = vcmp.lt.s32.totalorder %v224, 32
        %v648 = vsel %vm647, %v644, %v646
        %v649 = vsel %vm647, %v646, %v644
        %v650 = vrot.slane %v334, 2
        %v651 = vrot.slane %v335, 2
        %v654 = vmul.f32 %v649, %v650
        %v655 = vmul.f32 %v648, %v651
        %v656 = vadd.f32 %v641, %v654
        %v657 = vadd.f32 %v642, %v655
        %v658 = vrot.slane %v349, 1
        %v659 = vrot.slane %v350, 1
        %v662 = vmul.f32 %v649, %v658
        %v663 = vmul.f32 %v648, %v659
        %v666 = vrot.slane %v662, 1
        %v667 = vrot.slane %v663, 1
        %v670 = vadd.f32 %v656, %v666
        %v671 = vadd.f32 %v657, %v667
        %672 = vrot.lane.b32.xlu0 %v330, 31
        %v673 = vpop.permute.xlu0 %672
        %674 = vrot.lane.b32.xlu0 %v331, 31
        %v675 = vpop.permute.xlu0 %674
        %vm676 = vcmp.lt.s32.totalorder %v224, 31
        %v677 = vsel %vm676, %v673, %v675
        %v678 = vsel %vm676, %v675, %v673
        %v679 = vrot.slane %v334, 3
        %v680 = vrot.slane %v335, 3
        %v683 = vmul.f32 %v678, %v679
        %v684 = vmul.f32 %v677, %v680
        %v685 = vadd.f32 %v670, %v683
        %v686 = vadd.f32 %v671, %v684
        %v687 = vrot.slane %v349, 2
        %v688 = vrot.slane %v350, 2
        %v691 = vmul.f32 %v678, %v687
        %v692 = vmul.f32 %v677, %v688
        %v695 = vrot.slane %v691, 1
        %v696 = vrot.slane %v692, 1
        %v699 = vadd.f32 %v685, %v695
        %v700 = vadd.f32 %v686, %v696
        %701 = vrot.lane.b32.xlu0 %v330, 30
        %v702 = vpop.permute.xlu0 %701
        %703 = vrot.lane.b32.xlu0 %v331, 30
        %v704 = vpop.permute.xlu0 %703
        %vm705 = vcmp.lt.s32.totalorder %v224, 30
        %v706 = vsel %vm705, %v702, %v704
        %v707 = vsel %vm705, %v704, %v702
        %v708 = vrot.slane %v334, 4
        %v709 = vrot.slane %v335, 4
        %v712 = vmul.f32 %v707, %v708
        %v713 = vmul.f32 %v706, %v709
        %v714 = vadd.f32 %v699, %v712
        %v715 = vadd.f32 %v700, %v713
        %v716 = vrot.slane %v349, 3
        %v717 = vrot.slane %v350, 3
        %v720 = vmul.f32 %v707, %v716
        %v721 = vmul.f32 %v706, %v717
        %v724 = vrot.slane %v720, 1
        %v725 = vrot.slane %v721, 1
        %v728 = vadd.f32 %v714, %v724
        %v729 = vadd.f32 %v715, %v725
        %730 = vrot.lane.b32.xlu0 %v330, 29
        %v731 = vpop.permute.xlu0 %730
        %732 = vrot.lane.b32.xlu0 %v331, 29
        %v733 = vpop.permute.xlu0 %732
        %vm734 = vcmp.lt.s32.totalorder %v224, 29
        %v735 = vsel %vm734, %v731, %v733
        %v736 = vsel %vm734, %v733, %v731
        %v737 = vrot.slane %v334, 5
        %v738 = vrot.slane %v335, 5
        %v741 = vmul.f32 %v736, %v737
        %v742 = vmul.f32 %v735, %v738
        %v743 = vadd.f32 %v728, %v741
        %v744 = vadd.f32 %v729, %v742
        %v745 = vrot.slane %v349, 4
        %v746 = vrot.slane %v350, 4
        %v749 = vmul.f32 %v736, %v745
        %v750 = vmul.f32 %v735, %v746
        %v753 = vrot.slane %v749, 1
        %v754 = vrot.slane %v750, 1
        %v757 = vadd.f32 %v743, %v753
        %v758 = vadd.f32 %v744, %v754
        %759 = vrot.lane.b32.xlu0 %v330, 19
        %v760 = vpop.permute.xlu0 %759
        %761 = vrot.lane.b32.xlu0 %v331, 19
        %v762 = vpop.permute.xlu0 %761
        %vm763 = vcmp.lt.s32.totalorder %v224, 19
        %v764 = vsel %vm763, %v760, %v762
        %v765 = vsel %vm763, %v762, %v760
        %v766 = vrot.slane %v334, 6
        %v767 = vrot.slane %v335, 6
        %v770 = vmul.f32 %v765, %v766
        %v771 = vmul.f32 %v764, %v767
        %v772 = vadd.f32 %v757, %v770
        %v773 = vadd.f32 %v758, %v771
        %v774 = vrot.slane %v349, 5
        %v775 = vrot.slane %v350, 5
        %v778 = vmul.f32 %v765, %v774
        %v779 = vmul.f32 %v764, %v775
        %v782 = vrot.slane %v778, 1
        %v783 = vrot.slane %v779, 1
        %v786 = vadd.f32 %v772, %v782
        %v787 = vadd.f32 %v773, %v783
        %788 = vrot.lane.b32.xlu0 %v330, 18
        %v789 = vpop.permute.xlu0 %788
        %790 = vrot.lane.b32.xlu0 %v331, 18
        %v791 = vpop.permute.xlu0 %790
        %vm792 = vcmp.lt.s32.totalorder %v224, 18
        %v793 = vsel %vm792, %v789, %v791
        %v794 = vsel %vm792, %v791, %v789
        %v795 = vrot.slane %v334, 7
        %v796 = vrot.slane %v335, 7
        %v799 = vmul.f32 %v794, %v795
        %v800 = vmul.f32 %v793, %v796
        %v801 = vadd.f32 %v786, %v799
        %v802 = vadd.f32 %v787, %v800
        %v803 = vrot.slane %v349, 6
        %v804 = vrot.slane %v350, 6
        %v807 = vmul.f32 %v794, %v803
        %v808 = vmul.f32 %v793, %v804
        %v811 = vrot.slane %v807, 1
        %v812 = vrot.slane %v808, 1
        %v815 = vadd.f32 %v801, %v811
        %v816 = vadd.f32 %v802, %v812
        %817 = vrot.lane.b32.xlu0 %v330, 17
        %v818 = vpop.permute.xlu0 %817
        %819 = vrot.lane.b32.xlu0 %v331, 17
        %v820 = vpop.permute.xlu0 %819
        %vm821 = vcmp.lt.s32.totalorder %v224, 17
        %v822 = vsel %vm821, %v818, %v820
        %v823 = vsel %vm821, %v820, %v818
        %v824 = vmul.f32 %v823, %v336
        %v825 = vmul.f32 %v822, %v337
        %v826 = vadd.f32 %v815, %v824
        %v827 = vadd.f32 %v816, %v825
        %v830 = vrot.slane %v351, 7
        %v831 = vrot.slane %v352, 7
        %v834 = vmul.f32 %v823, %v830
        %v835 = vmul.f32 %v822, %v831
        %v838 = vrot.slane %v834, 1
        %v839 = vrot.slane %v835, 1
        %v842 = vadd.f32 %v826, %v838
        %v843 = vadd.f32 %v827, %v839
        %844 = vrot.lane.b32.xlu0 %v330, 16
        %v845 = vpop.permute.xlu0 %844
        %846 = vrot.lane.b32.xlu0 %v331, 16
        %v847 = vpop.permute.xlu0 %846
        %vm848 = vcmp.lt.s32.totalorder %v224, 16
        %v849 = vsel %vm848, %v845, %v847
        %v850 = vsel %vm848, %v847, %v845
        %v853 = vrot.slane %v336, 1
        %v854 = vrot.slane %v337, 1
        %v857 = vmul.f32 %v850, %v853
        %v858 = vmul.f32 %v849, %v854
        %v859 = vadd.f32 %v842, %v857
        %v860 = vadd.f32 %v843, %v858
        %v861 = vmul.f32 %v850, %v351
        %v862 = vmul.f32 %v849, %v352
        %v865 = vrot.slane %v861, 1
        %v866 = vrot.slane %v862, 1
        %v869 = vadd.f32 %v859, %v865
        %v870 = vadd.f32 %v860, %v866
        %871 = vrot.lane.b32.xlu0 %v330, 15
        %v872 = vpop.permute.xlu0 %871
        %873 = vrot.lane.b32.xlu0 %v331, 15
        %v874 = vpop.permute.xlu0 %873
        %vm875 = vcmp.lt.s32.totalorder %v224, 15
        %v876 = vsel %vm875, %v872, %v874
        %v877 = vsel %vm875, %v874, %v872
        %v878 = vrot.slane %v336, 2
        %v879 = vrot.slane %v337, 2
        %v882 = vmul.f32 %v877, %v878
        %v883 = vmul.f32 %v876, %v879
        %v884 = vadd.f32 %v869, %v882
        %v885 = vadd.f32 %v870, %v883
        %v886 = vrot.slane %v351, 1
        %v887 = vrot.slane %v352, 1
        %v890 = vmul.f32 %v877, %v886
        %v891 = vmul.f32 %v876, %v887
        %v894 = vrot.slane %v890, 1
        %v895 = vrot.slane %v891, 1
        %v898 = vadd.f32 %v884, %v894
        %v899 = vadd.f32 %v885, %v895
        %900 = vrot.lane.b32.xlu0 %v330, 14
        %v901 = vpop.permute.xlu0 %900
        %902 = vrot.lane.b32.xlu0 %v331, 14
        %v903 = vpop.permute.xlu0 %902
        %vm904 = vcmp.lt.s32.totalorder %v224, 14
        %v905 = vsel %vm904, %v901, %v903
        %v906 = vsel %vm904, %v903, %v901
        %v907 = vrot.slane %v336, 3
        %v908 = vrot.slane %v337, 3
        %v911 = vmul.f32 %v906, %v907
        %v912 = vmul.f32 %v905, %v908
        %v913 = vadd.f32 %v898, %v911
        %v914 = vadd.f32 %v899, %v912
        %v915 = vrot.slane %v351, 2
        %v916 = vrot.slane %v352, 2
        %v919 = vmul.f32 %v906, %v915
        %v920 = vmul.f32 %v905, %v916
        %v923 = vrot.slane %v919, 1
        %v924 = vrot.slane %v920, 1
        %v927 = vadd.f32 %v913, %v923
        %v928 = vadd.f32 %v914, %v924
        %929 = vrot.lane.b32.xlu0 %v330, 13
        %v930 = vpop.permute.xlu0 %929
        %931 = vrot.lane.b32.xlu0 %v331, 13
        %v932 = vpop.permute.xlu0 %931
        %vm933 = vcmp.lt.s32.totalorder %v224, 13
        %v934 = vsel %vm933, %v930, %v932
        %v935 = vsel %vm933, %v932, %v930
        %v936 = vrot.slane %v336, 4
        %v937 = vrot.slane %v337, 4
        %v940 = vmul.f32 %v935, %v936
        %v941 = vmul.f32 %v934, %v937
        %v942 = vadd.f32 %v927, %v940
        %v943 = vadd.f32 %v928, %v941
        %v944 = vrot.slane %v351, 3
        %v945 = vrot.slane %v352, 3
        %v948 = vmul.f32 %v935, %v944
        %v949 = vmul.f32 %v934, %v945
        %v952 = vrot.slane %v948, 1
        %v953 = vrot.slane %v949, 1
        %v956 = vadd.f32 %v942, %v952
        %v957 = vadd.f32 %v943, %v953
        %958 = vrot.lane.b32.xlu0 %v330, 3
        %v959 = vpop.permute.xlu0 %958
        %960 = vrot.lane.b32.xlu0 %v331, 3
        %v961 = vpop.permute.xlu0 %960
        %vm962 = vcmp.lt.s32.totalorder %v224, 3
        %v963 = vsel %vm962, %v959, %v961
        %v964 = vsel %vm962, %v961, %v959
        %v965 = vrot.slane %v336, 5
        %v966 = vrot.slane %v337, 5
        %v969 = vmul.f32 %v964, %v965
        %v970 = vmul.f32 %v963, %v966
        %v971 = vadd.f32 %v956, %v969
        %v972 = vadd.f32 %v957, %v970
        %v973 = vrot.slane %v351, 4
        %v974 = vrot.slane %v352, 4
        %v977 = vmul.f32 %v964, %v973
        %v978 = vmul.f32 %v963, %v974
        %v981 = vrot.slane %v977, 1
        %v982 = vrot.slane %v978, 1
        %v985 = vadd.f32 %v971, %v981
        %v986 = vadd.f32 %v972, %v982
        %987 = vrot.lane.b32.xlu0 %v330, 2
        %v988 = vpop.permute.xlu0 %987
        %989 = vrot.lane.b32.xlu0 %v331, 2
        %v990 = vpop.permute.xlu0 %989
        %vm991 = vcmp.lt.s32.totalorder %v224, 2
        %v992 = vsel %vm991, %v988, %v990
        %v993 = vsel %vm991, %v990, %v988
        %v994 = vrot.slane %v336, 6
        %v995 = vrot.slane %v337, 6
        %v998 = vmul.f32 %v993, %v994
        %v999 = vmul.f32 %v992, %v995
        %v1000 = vadd.f32 %v985, %v998
        %v1001 = vadd.f32 %v986, %v999
        %v1002 = vrot.slane %v351, 5
        %v1003 = vrot.slane %v352, 5
        %v1006 = vmul.f32 %v993, %v1002
        %v1007 = vmul.f32 %v992, %v1003
        %v1010 = vrot.slane %v1006, 1
        %v1011 = vrot.slane %v1007, 1
        %v1014 = vadd.f32 %v1000, %v1010
        %v1015 = vadd.f32 %v1001, %v1011
        %1016 = vrot.lane.b32.xlu0 %v330, 1
        %v1017 = vpop.permute.xlu0 %1016
        %1018 = vrot.lane.b32.xlu0 %v331, 1
        %v1019 = vpop.permute.xlu0 %1018
        %vm1020 = vcmp.lt.s32.totalorder %v224, 1
        %v1021 = vsel %vm1020, %v1017, %v1019
        %v1022 = vsel %vm1020, %v1019, %v1017
        %v1023 = vrot.slane %v336, 7
        %v1024 = vrot.slane %v337, 7
        %v1027 = vmul.f32 %v1022, %v1023
        %v1028 = vmul.f32 %v1021, %v1024
        %v1029 = vadd.f32 %v1014, %v1027
        %v1030 = vadd.f32 %v1015, %v1028
        %v1031 = vrot.slane %v351, 6
        %v1032 = vrot.slane %v352, 6
        %v1035 = vmul.f32 %v1022, %v1031
        %v1036 = vmul.f32 %v1021, %v1032
        %v1039 = vrot.slane %v1035, 1
        %v1040 = vrot.slane %v1036, 1
        %v1043 = vadd.f32 %v1029, %v1039
        %v1044 = vadd.f32 %v1030, %v1040
        %v1045 = vmul.f32 %v330, %v338
        %v1046 = vmul.f32 %v331, %v339
        %v1047 = vadd.f32 %v1043, %v1045
        %v1048 = vadd.f32 %v1044, %v1046
        %v1051 = vrot.slane %v353, 7
        %v1052 = vrot.slane %v354, 7
        %v1055 = vmul.f32 %v330, %v1051
        %v1056 = vmul.f32 %v331, %v1052
        %v1059 = vrot.slane %v1055, 1
        %v1060 = vrot.slane %v1056, 1
        %v1063 = vadd.f32 %v1047, %v1059
        %v1064 = vadd.f32 %v1048, %v1060
        %1065 = vrot.lane.b32.xlu0 %v330, 127
        %v1066 = vpop.permute.xlu0 %1065
        %1067 = vrot.lane.b32.xlu0 %v331, 127
        %v1068 = vpop.permute.xlu0 %1067
        %vm1069 = vcmp.lt.s32.totalorder %v224, 127
        %v1070 = vsel %vm1069, %v1066, %v1068
        %v1071 = vsel %vm1069, %v1068, %v1066
        %v1074 = vrot.slane %v338, 1
        %v1075 = vrot.slane %v339, 1
        %v1078 = vmul.f32 %v1070, %v1074
        %v1079 = vmul.f32 %v1071, %v1075
        %v1080 = vadd.f32 %v1063, %v1078
        %v1081 = vadd.f32 %v1064, %v1079
        %v1082 = vmul.f32 %v1070, %v353
        %v1083 = vmul.f32 %v1071, %v354
        %v1086 = vrot.slane %v1082, 1
        %v1087 = vrot.slane %v1083, 1
        %v1090 = vadd.f32 %v1080, %v1086
        %v1091 = vadd.f32 %v1081, %v1087
        %1092 = vrot.lane.b32.xlu0 %v330, 126
        %v1093 = vpop.permute.xlu0 %1092
        %1094 = vrot.lane.b32.xlu0 %v331, 126
        %v1095 = vpop.permute.xlu0 %1094
        %vm1096 = vcmp.lt.s32.totalorder %v224, 126
        %v1097 = vsel %vm1096, %v1093, %v1095
        %v1098 = vsel %vm1096, %v1095, %v1093
        %v1099 = vrot.slane %v338, 2
        %v1100 = vrot.slane %v339, 2
        %v1103 = vmul.f32 %v1097, %v1099
        %v1104 = vmul.f32 %v1098, %v1100
        %v1105 = vadd.f32 %v1090, %v1103
        %v1106 = vadd.f32 %v1091, %v1104
        %v1107 = vrot.slane %v353, 1
        %v1108 = vrot.slane %v354, 1
        %v1111 = vmul.f32 %v1097, %v1107
        %v1112 = vmul.f32 %v1098, %v1108
        %v1115 = vrot.slane %v1111, 1
        %v1116 = vrot.slane %v1112, 1
        %v1119 = vadd.f32 %v1105, %v1115
        %v1120 = vadd.f32 %v1106, %v1116
        %1121 = vrot.lane.b32.xlu0 %v330, 125
        %v1122 = vpop.permute.xlu0 %1121
        %1123 = vrot.lane.b32.xlu0 %v331, 125
        %v1124 = vpop.permute.xlu0 %1123
        %vm1125 = vcmp.lt.s32.totalorder %v224, 125
        %v1126 = vsel %vm1125, %v1122, %v1124
        %v1127 = vsel %vm1125, %v1124, %v1122
        %v1128 = vrot.slane %v338, 3
        %v1129 = vrot.slane %v339, 3
        %v1132 = vmul.f32 %v1126, %v1128
        %v1133 = vmul.f32 %v1127, %v1129
        %v1134 = vadd.f32 %v1119, %v1132
        %v1135 = vadd.f32 %v1120, %v1133
        %v1136 = vrot.slane %v353, 2
        %v1137 = vrot.slane %v354, 2
        %v1140 = vmul.f32 %v1126, %v1136
        %v1141 = vmul.f32 %v1127, %v1137
        %v1144 = vrot.slane %v1140, 1
        %v1145 = vrot.slane %v1141, 1
        %v1148 = vadd.f32 %v1134, %v1144
        %v1149 = vadd.f32 %v1135, %v1145
        %1150 = vrot.lane.b32.xlu0 %v330, 115
        %v1151 = vpop.permute.xlu0 %1150
        %1152 = vrot.lane.b32.xlu0 %v331, 115
        %v1153 = vpop.permute.xlu0 %1152
        %vm1154 = vcmp.lt.s32.totalorder %v224, 115
        %v1155 = vsel %vm1154, %v1151, %v1153
        %v1156 = vsel %vm1154, %v1153, %v1151
        %v1157 = vrot.slane %v338, 4
        %v1158 = vrot.slane %v339, 4
        %v1161 = vmul.f32 %v1155, %v1157
        %v1162 = vmul.f32 %v1156, %v1158
        %v1163 = vadd.f32 %v1148, %v1161
        %v1164 = vadd.f32 %v1149, %v1162
        %v1165 = vrot.slane %v353, 3
        %v1166 = vrot.slane %v354, 3
        %v1169 = vmul.f32 %v1155, %v1165
        %v1170 = vmul.f32 %v1156, %v1166
        %v1173 = vrot.slane %v1169, 1
        %v1174 = vrot.slane %v1170, 1
        %v1177 = vadd.f32 %v1163, %v1173
        %v1178 = vadd.f32 %v1164, %v1174
        %1179 = vrot.lane.b32.xlu0 %v330, 114
        %v1180 = vpop.permute.xlu0 %1179
        %1181 = vrot.lane.b32.xlu0 %v331, 114
        %v1182 = vpop.permute.xlu0 %1181
        %vm1183 = vcmp.lt.s32.totalorder %v224, 114
        %v1184 = vsel %vm1183, %v1180, %v1182
        %v1185 = vsel %vm1183, %v1182, %v1180
        %v1186 = vrot.slane %v338, 5
        %v1187 = vrot.slane %v339, 5
        %v1190 = vmul.f32 %v1184, %v1186
        %v1191 = vmul.f32 %v1185, %v1187
        %v1192 = vadd.f32 %v1177, %v1190
        %v1193 = vadd.f32 %v1178, %v1191
        %v1194 = vrot.slane %v353, 4
        %v1195 = vrot.slane %v354, 4
        %v1198 = vmul.f32 %v1184, %v1194
        %v1199 = vmul.f32 %v1185, %v1195
        %v1202 = vrot.slane %v1198, 1
        %v1203 = vrot.slane %v1199, 1
        %v1206 = vadd.f32 %v1192, %v1202
        %v1207 = vadd.f32 %v1193, %v1203
        %1208 = vrot.lane.b32.xlu0 %v330, 113
        %v1209 = vpop.permute.xlu0 %1208
        %1210 = vrot.lane.b32.xlu0 %v331, 113
        %v1211 = vpop.permute.xlu0 %1210
        %vm1212 = vcmp.lt.s32.totalorder %v224, 113
        %v1213 = vsel %vm1212, %v1209, %v1211
        %v1214 = vsel %vm1212, %v1211, %v1209
        %v1215 = vrot.slane %v338, 6
        %v1216 = vrot.slane %v339, 6
        %v1219 = vmul.f32 %v1213, %v1215
        %v1220 = vmul.f32 %v1214, %v1216
        %v1221 = vadd.f32 %v1206, %v1219
        %v1222 = vadd.f32 %v1207, %v1220
        %v1223 = vrot.slane %v353, 5
        %v1224 = vrot.slane %v354, 5
        %v1227 = vmul.f32 %v1213, %v1223
        %v1228 = vmul.f32 %v1214, %v1224
        %v1231 = vrot.slane %v1227, 1
        %v1232 = vrot.slane %v1228, 1
        %v1235 = vadd.f32 %v1221, %v1231
        %v1236 = vadd.f32 %v1222, %v1232
        %1237 = vrot.lane.b32.xlu0 %v330, 112
        %v1238 = vpop.permute.xlu0 %1237
        %1239 = vrot.lane.b32.xlu0 %v331, 112
        %v1240 = vpop.permute.xlu0 %1239
        %vm1241 = vcmp.lt.s32.totalorder %v224, 112
        %v1242 = vsel %vm1241, %v1238, %v1240
        %v1243 = vsel %vm1241, %v1240, %v1238
        %v1244 = vrot.slane %v338, 7
        %v1245 = vrot.slane %v339, 7
        %v1248 = vmul.f32 %v1242, %v1244
        %v1249 = vmul.f32 %v1243, %v1245
        %v1250 = vadd.f32 %v1235, %v1248
        %v1251 = vadd.f32 %v1236, %v1249
        %v1252 = vrot.slane %v353, 6
        %v1253 = vrot.slane %v354, 6
        %v1256 = vmul.f32 %v1242, %v1252
        %v1257 = vmul.f32 %v1243, %v1253
        %v1260 = vrot.slane %v1256, 1
        %v1261 = vrot.slane %v1257, 1
        %v1264 = vadd.f32 %v1250, %v1260
        %v1265 = vadd.f32 %v1251, %v1261
        %1266 = vrot.lane.b32.xlu0 %v330, 111
        %v1267 = vpop.permute.xlu0 %1266
        %1268 = vrot.lane.b32.xlu0 %v331, 111
        %v1269 = vpop.permute.xlu0 %1268
        %vm1270 = vcmp.lt.s32.totalorder %v224, 111
        %v1271 = vsel %vm1270, %v1267, %v1269
        %v1272 = vsel %vm1270, %v1269, %v1267
        %v1273 = vmul.f32 %v1271, %v340
        %v1274 = vmul.f32 %v1272, %v341
        %v1275 = vadd.f32 %v1264, %v1273
        %v1276 = vadd.f32 %v1265, %v1274
        %v1279 = vrot.slane %v355, 7
        %v1280 = vrot.slane %v356, 7
        %v1283 = vmul.f32 %v1271, %v1279
        %v1284 = vmul.f32 %v1272, %v1280
        %v1287 = vrot.slane %v1283, 1
        %v1288 = vrot.slane %v1284, 1
        %v1291 = vadd.f32 %v1275, %v1287
        %v1292 = vadd.f32 %v1276, %v1288
        %1293 = vrot.lane.b32.xlu0 %v330, 110
        %v1294 = vpop.permute.xlu0 %1293
        %1295 = vrot.lane.b32.xlu0 %v331, 110
        %v1296 = vpop.permute.xlu0 %1295
        %vm1297 = vcmp.lt.s32.totalorder %v224, 110
        %v1298 = vsel %vm1297, %v1294, %v1296
        %v1299 = vsel %vm1297, %v1296, %v1294
        %v1302 = vrot.slane %v340, 1
        %v1303 = vrot.slane %v341, 1
        %v1306 = vmul.f32 %v1298, %v1302
        %v1307 = vmul.f32 %v1299, %v1303
        %v1308 = vadd.f32 %v1291, %v1306
        %v1309 = vadd.f32 %v1292, %v1307
        %v1310 = vmul.f32 %v1298, %v355
        %v1311 = vmul.f32 %v1299, %v356
        %v1314 = vrot.slane %v1310, 1
        %v1315 = vrot.slane %v1311, 1
        %v1318 = vadd.f32 %v1308, %v1314
        %v1319 = vadd.f32 %v1309, %v1315
        %1320 = vrot.lane.b32.xlu0 %v330, 109
        %v1321 = vpop.permute.xlu0 %1320
        %1322 = vrot.lane.b32.xlu0 %v331, 109
        %v1323 = vpop.permute.xlu0 %1322
        %vm1324 = vcmp.lt.s32.totalorder %v224, 109
        %v1325 = vsel %vm1324, %v1321, %v1323
        %v1326 = vsel %vm1324, %v1323, %v1321
        %v1327 = vrot.slane %v340, 2
        %v1328 = vrot.slane %v341, 2
        %v1331 = vmul.f32 %v1325, %v1327
        %v1332 = vmul.f32 %v1326, %v1328
        %v1333 = vadd.f32 %v1318, %v1331
        %v1334 = vadd.f32 %v1319, %v1332
        %v1335 = vrot.slane %v355, 1
        %v1336 = vrot.slane %v356, 1
        %v1339 = vmul.f32 %v1325, %v1335
        %v1340 = vmul.f32 %v1326, %v1336
        %v1343 = vrot.slane %v1339, 1
        %v1344 = vrot.slane %v1340, 1
        %v1347 = vadd.f32 %v1333, %v1343
        %v1348 = vadd.f32 %v1334, %v1344
        %1349 = vrot.lane.b32.xlu0 %v330, 99
        %v1350 = vpop.permute.xlu0 %1349
        %1351 = vrot.lane.b32.xlu0 %v331, 99
        %v1352 = vpop.permute.xlu0 %1351
        %vm1353 = vcmp.lt.s32.totalorder %v224, 99
        %v1354 = vsel %vm1353, %v1350, %v1352
        %v1355 = vsel %vm1353, %v1352, %v1350
        %v1356 = vrot.slane %v340, 3
        %v1357 = vrot.slane %v341, 3
        %v1360 = vmul.f32 %v1354, %v1356
        %v1361 = vmul.f32 %v1355, %v1357
        %v1362 = vadd.f32 %v1347, %v1360
        %v1363 = vadd.f32 %v1348, %v1361
        %v1364 = vrot.slane %v355, 2
        %v1365 = vrot.slane %v356, 2
        %v1368 = vmul.f32 %v1354, %v1364
        %v1369 = vmul.f32 %v1355, %v1365
        %v1372 = vrot.slane %v1368, 1
        %v1373 = vrot.slane %v1369, 1
        %v1376 = vadd.f32 %v1362, %v1372
        %v1377 = vadd.f32 %v1363, %v1373
        %1378 = vrot.lane.b32.xlu0 %v330, 98
        %v1379 = vpop.permute.xlu0 %1378
        %1380 = vrot.lane.b32.xlu0 %v331, 98
        %v1381 = vpop.permute.xlu0 %1380
        %vm1382 = vcmp.lt.s32.totalorder %v224, 98
        %v1383 = vsel %vm1382, %v1379, %v1381
        %v1384 = vsel %vm1382, %v1381, %v1379
        %v1385 = vrot.slane %v340, 4
        %v1386 = vrot.slane %v341, 4
        %v1389 = vmul.f32 %v1383, %v1385
        %v1390 = vmul.f32 %v1384, %v1386
        %v1391 = vadd.f32 %v1376, %v1389
        %v1392 = vadd.f32 %v1377, %v1390
        %v1393 = vrot.slane %v355, 3
        %v1394 = vrot.slane %v356, 3
        %v1397 = vmul.f32 %v1383, %v1393
        %v1398 = vmul.f32 %v1384, %v1394
        %v1401 = vrot.slane %v1397, 1
        %v1402 = vrot.slane %v1398, 1
        %v1405 = vadd.f32 %v1391, %v1401
        %v1406 = vadd.f32 %v1392, %v1402
        %1407 = vrot.lane.b32.xlu0 %v330, 97
        %v1408 = vpop.permute.xlu0 %1407
        %1409 = vrot.lane.b32.xlu0 %v331, 97
        %v1410 = vpop.permute.xlu0 %1409
        %vm1411 = vcmp.lt.s32.totalorder %v224, 97
        %v1412 = vsel %vm1411, %v1408, %v1410
        %v1413 = vsel %vm1411, %v1410, %v1408
        %v1414 = vrot.slane %v340, 5
        %v1415 = vrot.slane %v341, 5
        %v1418 = vmul.f32 %v1412, %v1414
        %v1419 = vmul.f32 %v1413, %v1415
        %v1420 = vadd.f32 %v1405, %v1418
        %v1421 = vadd.f32 %v1406, %v1419
        %v1422 = vrot.slane %v355, 4
        %v1423 = vrot.slane %v356, 4
        %v1426 = vmul.f32 %v1412, %v1422
        %v1427 = vmul.f32 %v1413, %v1423
        %v1430 = vrot.slane %v1426, 1
        %v1431 = vrot.slane %v1427, 1
        %v1434 = vadd.f32 %v1420, %v1430
        %v1435 = vadd.f32 %v1421, %v1431
        %1436 = vrot.lane.b32.xlu0 %v330, 96
        %v1437 = vpop.permute.xlu0 %1436
        %1438 = vrot.lane.b32.xlu0 %v331, 96
        %v1439 = vpop.permute.xlu0 %1438
        %vm1440 = vcmp.lt.s32.totalorder %v224, 96
        %v1441 = vsel %vm1440, %v1437, %v1439
        %v1442 = vsel %vm1440, %v1439, %v1437
        %v1443 = vrot.slane %v340, 6
        %v1444 = vrot.slane %v341, 6
        %v1447 = vmul.f32 %v1441, %v1443
        %v1448 = vmul.f32 %v1442, %v1444
        %v1449 = vadd.f32 %v1434, %v1447
        %v1450 = vadd.f32 %v1435, %v1448
        %v1451 = vrot.slane %v355, 5
        %v1452 = vrot.slane %v356, 5
        %v1455 = vmul.f32 %v1441, %v1451
        %v1456 = vmul.f32 %v1442, %v1452
        %v1459 = vrot.slane %v1455, 1
        %v1460 = vrot.slane %v1456, 1
        %v1463 = vadd.f32 %v1449, %v1459
        %v1464 = vadd.f32 %v1450, %v1460
        %1465 = vrot.lane.b32.xlu0 %v330, 95
        %v1466 = vpop.permute.xlu0 %1465
        %1467 = vrot.lane.b32.xlu0 %v331, 95
        %v1468 = vpop.permute.xlu0 %1467
        %vm1469 = vcmp.lt.s32.totalorder %v224, 95
        %v1470 = vsel %vm1469, %v1466, %v1468
        %v1471 = vsel %vm1469, %v1468, %v1466
        %v1472 = vrot.slane %v340, 7
        %v1473 = vrot.slane %v341, 7
        %v1476 = vmul.f32 %v1470, %v1472
        %v1477 = vmul.f32 %v1471, %v1473
        %v1478 = vadd.f32 %v1463, %v1476
        %v1479 = vadd.f32 %v1464, %v1477
        %v1480 = vrot.slane %v355, 6
        %v1481 = vrot.slane %v356, 6
        %v1484 = vmul.f32 %v1470, %v1480
        %v1485 = vmul.f32 %v1471, %v1481
        %v1488 = vrot.slane %v1484, 1
        %v1489 = vrot.slane %v1485, 1
        %v1492 = vadd.f32 %v1478, %v1488
        %v1493 = vadd.f32 %v1479, %v1489
        %1494 = vrot.lane.b32.xlu0 %v330, 94
        %v1495 = vpop.permute.xlu0 %1494
        %1496 = vrot.lane.b32.xlu0 %v331, 94
        %v1497 = vpop.permute.xlu0 %1496
        %vm1498 = vcmp.lt.s32.totalorder %v224, 94
        %v1499 = vsel %vm1498, %v1495, %v1497
        %v1500 = vsel %vm1498, %v1497, %v1495
        %v1501 = vmul.f32 %v1499, %v342
        %v1502 = vmul.f32 %v1500, %v343
        %v1503 = vadd.f32 %v1492, %v1501
        %v1504 = vadd.f32 %v1493, %v1502
        %v1507 = vrot.slane %v357, 7
        %v1508 = vrot.slane %v358, 7
        %v1511 = vmul.f32 %v1499, %v1507
        %v1512 = vmul.f32 %v1500, %v1508
        %v1515 = vrot.slane %v1511, 1
        %v1516 = vrot.slane %v1512, 1
        %v1519 = vadd.f32 %v1503, %v1515
        %v1520 = vadd.f32 %v1504, %v1516
        %1521 = vrot.lane.b32.xlu0 %v330, 93
        %v1522 = vpop.permute.xlu0 %1521
        %1523 = vrot.lane.b32.xlu0 %v331, 93
        %v1524 = vpop.permute.xlu0 %1523
        %vm1525 = vcmp.lt.s32.totalorder %v224, 93
        %v1526 = vsel %vm1525, %v1522, %v1524
        %v1527 = vsel %vm1525, %v1524, %v1522
        %v1530 = vrot.slane %v342, 1
        %v1531 = vrot.slane %v343, 1
        %v1534 = vmul.f32 %v1526, %v1530
        %v1535 = vmul.f32 %v1527, %v1531
        %v1536 = vadd.f32 %v1519, %v1534
        %v1537 = vadd.f32 %v1520, %v1535
        %v1538 = vmul.f32 %v1526, %v357
        %v1539 = vmul.f32 %v1527, %v358
        %v1542 = vrot.slane %v1538, 1
        %v1543 = vrot.slane %v1539, 1
        %v1546 = vadd.f32 %v1536, %v1542
        %v1547 = vadd.f32 %v1537, %v1543
        %1548 = vrot.lane.b32.xlu0 %v330, 83
        %v1549 = vpop.permute.xlu0 %1548
        %1550 = vrot.lane.b32.xlu0 %v331, 83
        %v1551 = vpop.permute.xlu0 %1550
        %vm1552 = vcmp.lt.s32.totalorder %v224, 83
        %v1553 = vsel %vm1552, %v1549, %v1551
        %v1554 = vsel %vm1552, %v1551, %v1549
        %v1555 = vrot.slane %v342, 2
        %v1556 = vrot.slane %v343, 2
        %v1559 = vmul.f32 %v1553, %v1555
        %v1560 = vmul.f32 %v1554, %v1556
        %v1561 = vadd.f32 %v1546, %v1559
        %v1562 = vadd.f32 %v1547, %v1560
        %v1563 = vrot.slane %v357, 1
        %v1564 = vrot.slane %v358, 1
        %v1567 = vmul.f32 %v1553, %v1563
        %v1568 = vmul.f32 %v1554, %v1564
        %v1571 = vrot.slane %v1567, 1
        %v1572 = vrot.slane %v1568, 1
        %v1575 = vadd.f32 %v1561, %v1571
        %v1576 = vadd.f32 %v1562, %v1572
        %1577 = vrot.lane.b32.xlu0 %v330, 82
        %v1578 = vpop.permute.xlu0 %1577
        %1579 = vrot.lane.b32.xlu0 %v331, 82
        %v1580 = vpop.permute.xlu0 %1579
        %vm1581 = vcmp.lt.s32.totalorder %v224, 82
        %v1582 = vsel %vm1581, %v1578, %v1580
        %v1583 = vsel %vm1581, %v1580, %v1578
        %v1584 = vrot.slane %v342, 3
        %v1585 = vrot.slane %v343, 3
        %v1588 = vmul.f32 %v1582, %v1584
        %v1589 = vmul.f32 %v1583, %v1585
        %v1590 = vadd.f32 %v1575, %v1588
        %v1591 = vadd.f32 %v1576, %v1589
        %v1592 = vrot.slane %v357, 2
        %v1593 = vrot.slane %v358, 2
        %v1596 = vmul.f32 %v1582, %v1592
        %v1597 = vmul.f32 %v1583, %v1593
        %v1600 = vrot.slane %v1596, 1
        %v1601 = vrot.slane %v1597, 1
        %v1604 = vadd.f32 %v1590, %v1600
        %v1605 = vadd.f32 %v1591, %v1601
        %1606 = vrot.lane.b32.xlu0 %v330, 81
        %v1607 = vpop.permute.xlu0 %1606
        %1608 = vrot.lane.b32.xlu0 %v331, 81
        %v1609 = vpop.permute.xlu0 %1608
        %vm1610 = vcmp.lt.s32.totalorder %v224, 81
        %v1611 = vsel %vm1610, %v1607, %v1609
        %v1612 = vsel %vm1610, %v1609, %v1607
        %v1613 = vrot.slane %v342, 4
        %v1614 = vrot.slane %v343, 4
        %v1617 = vmul.f32 %v1611, %v1613
        %v1618 = vmul.f32 %v1612, %v1614
        %v1619 = vadd.f32 %v1604, %v1617
        %v1620 = vadd.f32 %v1605, %v1618
        %v1621 = vrot.slane %v357, 3
        %v1622 = vrot.slane %v358, 3
        %v1625 = vmul.f32 %v1611, %v1621
        %v1626 = vmul.f32 %v1612, %v1622
        %v1629 = vrot.slane %v1625, 1
        %v1630 = vrot.slane %v1626, 1
        %v1633 = vadd.f32 %v1619, %v1629
        %v1634 = vadd.f32 %v1620, %v1630
        %1635 = vrot.lane.b32.xlu0 %v330, 80
        %v1636 = vpop.permute.xlu0 %1635
        %1637 = vrot.lane.b32.xlu0 %v331, 80
        %v1638 = vpop.permute.xlu0 %1637
        %vm1639 = vcmp.lt.s32.totalorder %v224, 80
        %v1640 = vsel %vm1639, %v1636, %v1638
        %v1641 = vsel %vm1639, %v1638, %v1636
        %v1642 = vrot.slane %v342, 5
        %v1643 = vrot.slane %v343, 5
        %v1646 = vmul.f32 %v1640, %v1642
        %v1647 = vmul.f32 %v1641, %v1643
        %v1648 = vadd.f32 %v1633, %v1646
        %v1649 = vadd.f32 %v1634, %v1647
        %v1650 = vrot.slane %v357, 4
        %v1651 = vrot.slane %v358, 4
        %v1654 = vmul.f32 %v1640, %v1650
        %v1655 = vmul.f32 %v1641, %v1651
        %v1658 = vrot.slane %v1654, 1
        %v1659 = vrot.slane %v1655, 1
        %v1662 = vadd.f32 %v1648, %v1658
        %v1663 = vadd.f32 %v1649, %v1659
        %1664 = vrot.lane.b32.xlu0 %v330, 79
        %v1665 = vpop.permute.xlu0 %1664
        %1666 = vrot.lane.b32.xlu0 %v331, 79
        %v1667 = vpop.permute.xlu0 %1666
        %vm1668 = vcmp.lt.s32.totalorder %v224, 79
        %v1669 = vsel %vm1668, %v1665, %v1667
        %v1670 = vsel %vm1668, %v1667, %v1665
        %v1671 = vrot.slane %v342, 6
        %v1672 = vrot.slane %v343, 6
        %v1675 = vmul.f32 %v1669, %v1671
        %v1676 = vmul.f32 %v1670, %v1672
        %v1677 = vadd.f32 %v1662, %v1675
        %v1678 = vadd.f32 %v1663, %v1676
        %v1679 = vrot.slane %v357, 5
        %v1680 = vrot.slane %v358, 5
        %v1683 = vmul.f32 %v1669, %v1679
        %v1684 = vmul.f32 %v1670, %v1680
        %v1687 = vrot.slane %v1683, 1
        %v1688 = vrot.slane %v1684, 1
        %v1691 = vadd.f32 %v1677, %v1687
        %v1692 = vadd.f32 %v1678, %v1688
        %1693 = vrot.lane.b32.xlu0 %v330, 78
        %v1694 = vpop.permute.xlu0 %1693
        %1695 = vrot.lane.b32.xlu0 %v331, 78
        %v1696 = vpop.permute.xlu0 %1695
        %vm1697 = vcmp.lt.s32.totalorder %v224, 78
        %v1698 = vsel %vm1697, %v1694, %v1696
        %v1699 = vsel %vm1697, %v1696, %v1694
        %v1700 = vrot.slane %v342, 7
        %v1701 = vrot.slane %v343, 7
        %v1704 = vmul.f32 %v1698, %v1700
        %v1705 = vmul.f32 %v1699, %v1701
        %v1706 = vadd.f32 %v1691, %v1704
        %v1707 = vadd.f32 %v1692, %v1705
        %v1708 = vrot.slane %v357, 6
        %v1709 = vrot.slane %v358, 6
        %v1712 = vmul.f32 %v1698, %v1708
        %v1713 = vmul.f32 %v1699, %v1709
        %v1716 = vrot.slane %v1712, 1
        %v1717 = vrot.slane %v1713, 1
        %v1720 = vadd.f32 %v1706, %v1716
        %v1721 = vadd.f32 %v1707, %v1717
        %1722 = vrot.lane.b32.xlu0 %v330, 77
        %v1723 = vpop.permute.xlu0 %1722
        %1724 = vrot.lane.b32.xlu0 %v331, 77
        %v1725 = vpop.permute.xlu0 %1724
        %vm1726 = vcmp.lt.s32.totalorder %v224, 77
        %v1727 = vsel %vm1726, %v1723, %v1725
        %v1728 = vsel %vm1726, %v1725, %v1723
        %v1729 = vmul.f32 %v1727, %v344
        %v1730 = vmul.f32 %v1728, %v345
        %v1731 = vadd.f32 %v1720, %v1729
        %v1732 = vadd.f32 %v1721, %v1730
        %v1735 = vrot.slane %v359, 7
        %v1736 = vrot.slane %v360, 7
        %v1739 = vmul.f32 %v1727, %v1735
        %v1740 = vmul.f32 %v1728, %v1736
        %v1743 = vrot.slane %v1739, 1
        %v1744 = vrot.slane %v1740, 1
        %v1747 = vadd.f32 %v1731, %v1743
        %v1748 = vadd.f32 %v1732, %v1744
        %v1749 = vxor.u32 %v1747, 2147483648
        %v1750 = vxor.u32 %v1748, 2147483648
        %v1751 = vmul.f32 %v1749, 1.442695
        %v1752 = vpow.pop %v1751
        %v1753 = vmul.f32 %v1750, 1.442695
        %v1754 = vpow.pop %v1753
        %v1755 = vadd.f32 %v1752, 1.0
        %v1756 = vadd.f32 %v1754, 1.0
        %v1757 = vrcp.pop %v1755
        %v1758 = vmul.f32 %v1755, %v1757
        %v1759 = vsub.f32 1.0, %v1758
        %v1760 = vmul.f32 %v1757, %v1759
        %v1761 = vadd.f32 %v1757, %v1760
        %vm1762 = vweird.f32 %v1755
        %vm1763 = vweird.f32 %v1757
        %vm1764 = vmor %vm1762, %vm1763
        %v1765 = vsel %vm1764, %v1757, %v1761
        %v1766 = vand.u32 2147483647, %v1755
        %vm1767 = vcmp.eq.f32.partialorder %v1766, 8.507059e+37
        %v1768 = vand.u32 %v1755, 2147483648
        %v1769 = vor.u32 1.1754944e-38, %v1768
        %v1770 = vsel %vm1767, %v1769, %v1765
        %v1771 = vmul.f32 1.0, %v1770
        %v1772 = vrcp.pop %v1756
        %v1773 = vmul.f32 %v1756, %v1772
        %v1774 = vsub.f32 1.0, %v1773
        %v1775 = vmul.f32 %v1772, %v1774
        %v1776 = vadd.f32 %v1772, %v1775
        %vm1777 = vweird.f32 %v1756
        %vm1778 = vweird.f32 %v1772
        %vm1779 = vmor %vm1777, %vm1778
        %v1780 = vsel %vm1779, %v1772, %v1776
        %v1781 = vand.u32 2147483647, %v1756
        %vm1782 = vcmp.eq.f32.partialorder %v1781, 8.507059e+37
        %v1783 = vand.u32 %v1756, 2147483648
        %v1784 = vor.u32 1.1754944e-38, %v1783
        %v1785 = vsel %vm1782, %v1784, %v1780
        %v1786 = vmul.f32 1.0, %v1785
        %v1787 = vperm.slane %v1771, 0
        %v1788 = vperm.slane %v1786, 0
        %v1791 = vrot.slane %v1788, 4
        %v1792 = vsel %vm205, %v1787, %v1791
        %v1794 = vmul.f32 %v281, %v1792
        %1795 = vst [vmem:[%s190] sm:$0xff] %v1794
        %s1796 = sand.u32 %s115, 1
        %s1797 = scalar_lea.sflag [#allocation3], %s1796
        %s1798 = sand.u32 %s115, 1
        %s1799 = smul.addr %s1798, 8
        %s1800 = scalar_lea.vmem [#allocation2], %s1799
        // Predicated region
        $region37: #{tpu_custom_call.1} parent=35 // pred_check
          %p1801 = pneg %p125
        $region38: #{tpu_custom_call.1} parent=35 // pred_check_branch
          %1803 = sbr.rel (%p1801) target = $region40
        $region39: #{tpu_custom_call.1} parent=35 // pred_region
          %1805 = vsyncadd %s1797, 0
          %s1806 = smul.addr %s18, 2
          %s1807 = smul.addr %s1806, 4
          %s1808 = scalar_lea.hbm %s4, %s1807
          %s1810 = sshll.u32 %s1800, 4
          %s1811 = int_to_ptr.vmem [resolvable:$true] %s1810
          %s1812 = sshll.u32 %s1808, 4
          %s1813 = int_to_ptr.hbm [resolvable:$true] %s1812
          %1815 = dma.vmem_to_hbm [thread:$0]  %s1811, 128, %s1813, %s1797
        $region40: #{tpu_custom_call.1} parent=35 // pred_fallthru
          _
      $region36: #{tpu_custom_call.1} parent=5 // pred_fallthru
        _
      %p1816 = scmp.le.s32.totalorder 2, %s13
      // Predicated region
      $region41: #{tpu_custom_call.1} parent=5 // pred_check
        %p1817 = pneg %p1816
      $region42: #{tpu_custom_call.1} parent=5 // pred_check_branch
        %1819 = sbr.rel (%p1817) target = $region44
      $region43: #{tpu_custom_call.1} parent=5 // pred_region
        %s1820 = ssub.s32 %s13, 2
        // Predicated region
        $region45: #{tpu_custom_call.1} parent=43 // pred_check
          %p1821 = pneg %p131
        $region46: #{tpu_custom_call.1} parent=43 // pred_check_branch
          %1823 = sbr.rel (%p1821) target = $region48
        $region47: #{tpu_custom_call.1} parent=43 // pred_region
          %s1824 = sand.u32 %s116, 1
          %s1825 = scalar_lea.sflag [#allocation3], %s1824
          %s1826 = sand.u32 %s116, 1
          %s1827 = smul.addr %s1826, 8
          %s1828 = scalar_lea.vmem [#allocation2], %s1827
          %1830 = dma.done %s1825, 128
        $region48: #{tpu_custom_call.1} parent=43 // pred_fallthru
          _
      $region44: #{tpu_custom_call.1} parent=5 // pred_fallthru
        _
    $region6: #{tpu_custom_call.1} parent=1 // loop_footer
      %s17 = sadd.s32 1, %s13
    $region7: #{tpu_custom_call.1} parent=1 // loop_footer_branch
      %12 = sbr.rel target = $region3
    $region8: #{tpu_custom_call.1} parent=1 // loop_exit
      _
    %1831 = vsyncpa [#allocation3], 1
    %s1832 = scalar_lea.sflag [#allocation3], 1
    %1833 = vsyncpa %s1832, 1

</llo_original>
